<compile_context>
chip_gen: v7x
topology: tpu7x:2x2x1
jax: 0.10.0
libtpu: 0.0.40
codegen_flags: <defaults>
</compile_context>

<pallas_src>
import functools

import jax
import jax.numpy as jnp
import numpy as np
from jax import lax
from jax.experimental import pallas as pl
from jax.experimental.pallas import tpu as pltpu

BN_EPS = 1e-5
VMEM_LIMIT = 32 * 1024 * 1024  # explicit (v5e scoped default is only 16 MiB)


def _pick_th(H_out, W_out, max_rows=2048):
    """Largest divisor th of H_out with th*W_out a multiple of 8 and <= max_rows."""
    best = None
    for th in range(1, H_out + 1):
        if H_out % th:
            continue
        rows = th * W_out
        if rows % 8 == 0 and rows <= max_rows:
            best = th
    # Fallback: single tile per batch element (block equals full dims, so the
    # (8,128) rule is still satisfied).
    return best if best is not None else H_out


def _pick_phase2_rows(M):
    """Row-tile for phase 2: multiple of 8 (or full M), capped at 512 rows."""
    if M <= 8:
        return M
    return min(512, (M // 8) * 8)


# --------------------------------------------------------------------------- #
# Phase 1: fused conv (single im2col matmul per tile) + centered BN partials.
# --------------------------------------------------------------------------- #
def _conv_stats_kernel(x_ref, w_ref, y_ref, sum_ref, css_ref, *,
                       K, stride, th, W_out, C_in, C_out):
    # x_ref   : (Hp, Wp, C_in)       whole padded image for this batch element
    # w_ref   : (K*K*C_in, C_out)    im2col-ordered weights
    # y_ref   : (th*W_out, C_out)    pre-BN conv output rows for this (b, h) tile
    # sum_ref / css_ref : (8, C_out) per-tile channel sum / centered sum-of-squares
    h = pl.program_id(1)
    row0 = h * th * stride

    taps = []
    for kh in range(K):
        for kw in range(K):
            if stride == 1:
                t = x_ref[pl.ds(row0 + kh, th), kw:kw + W_out, :]
            else:
                # TODO(synk): stride>1 uses strided sublane slices (XLU relayout
                # per tap); pre-split into stride phases in the wrapper if hot.
                t = x_ref[pl.ds(row0 + kh, th, stride),
                          pl.ds(kw, W_out, stride), :]
            taps.append(t.reshape(th * W_out, C_in))

    # One matmul with contraction K*K*C_in instead of K*K tiny dots + VPU adds.
    patches = jnp.concatenate(taps, axis=-1)                    # (th*W_out, K*K*C_in)
    acc = jnp.dot(patches, w_ref[...], preferred_element_type=jnp.float32)
    y_ref[...] = acc                                            # unpadded C_out store

    # Per-tile centered statistics (no E[y^2]-mean^2 cancellation).
    n = th * W_out
    s = jnp.sum(acc, axis=0, keepdims=True)                     # (1, C_out)
    m = s * (1.0 / n)
    d = acc - m
    css = jnp.sum(d * d, axis=0, keepdims=True)                 # (1, C_out)
    sum_ref[...] = jnp.broadcast_to(s, (8, C_out))
    css_ref[...] = jnp.broadcast_to(css, (8, C_out))


# --------------------------------------------------------------------------- #
# Phase 2: folded BN (scale/shift) + ReLU, lane-dense, in place over y.
# --------------------------------------------------------------------------- #
def _bn_relu_kernel(y_ref, scale_ref, shift_ref, o_ref):
    o_ref[...] = jnp.maximum(
        y_ref[...] * scale_ref[...] + shift_ref[...], 0.0
    ).astype(o_ref.dtype)


def conv_block_forward(x_nchw, weight, gamma, beta, *, stride, padding):
    """x_nchw: (B, C_in, H, W); weight: (C_out, C_in, K, K); gamma/beta: (C_out,)."""
    B, C_in, H, W = x_nchw.shape
    C_out, _, K, _ = weight.shape

    # --- layout glue (cheap, contiguous): NCHW -> padded NHWC; OIHW -> im2col ---
    xp = jnp.pad(x_nchw, ((0, 0), (0, 0), (padding, padding), (padding, padding)))
    xp = xp.transpose(0, 2, 3, 1).astype(jnp.float32)            # (B, Hp, Wp, C_in)
    Hp, Wp = H + 2 * padding, W + 2 * padding
    H_out = (Hp - K) // stride + 1
    W_out = (Wp - K) // stride + 1

    # (kh, kw, c_in, c_out) ordering matches the in-kernel patch concatenation.
    w2 = weight.astype(jnp.float32).transpose(2, 3, 1, 0).reshape(K * K * C_in, C_out)

    th = _pick_th(H_out, W_out)
    n_h = H_out // th
    rows = th * W_out
    M_pix = B * H_out * W_out

    kernel1 = functools.partial(
        _conv_stats_kernel, K=K, stride=stride, th=th,
        W_out=W_out, C_in=C_in, C_out=C_out)

    flops1 = 2 * M_pix * (K * K * C_in) * C_out
    bytes1 = 4 * (B * Hp * Wp * C_in + K * K * C_in * C_out
                  + M_pix * C_out + 2 * B * n_h * 8 * C_out)

    y, psum, pcss = pl.pallas_call(
        kernel1,
        out_shape=(
            jax.ShapeDtypeStruct((B, H_out * W_out, C_out), jnp.float32),
            jax.ShapeDtypeStruct((B, n_h, 8, C_out), jnp.float32),
            jax.ShapeDtypeStruct((B, n_h, 8, C_out), jnp.float32),
        ),
        grid=(B, n_h),
        in_specs=[
            pl.BlockSpec((None, Hp, Wp, C_in), lambda b, h: (b, 0, 0, 0)),
            pl.BlockSpec((K * K * C_in, C_out), lambda b, h: (0, 0)),
        ],
        out_specs=(
            pl.BlockSpec((None, rows, C_out), lambda b, h: (b, h, 0)),
            pl.BlockSpec((None, None, 8, C_out), lambda b, h: (b, h, 0, 0)),
            pl.BlockSpec((None, None, 8, C_out), lambda b, h: (b, h, 0, 0)),
        ),
        compiler_params=pltpu.CompilerParams(
            dimension_semantics=("parallel", "parallel"),
            vmem_limit_bytes=VMEM_LIMIT,
        ),
        cost_estimate=pl.CostEstimate(
            flops=flops1, transcendentals=0, bytes_accessed=bytes1),
    )(xp, w2)

    # --- combine per-tile centered stats (parallel variance) and fold BN ---
    n_t = float(rows)
    s_t = psum[:, :, 0, :]                                        # (B, n_h, C_out)
    css_t = pcss[:, :, 0, :]                                      # (B, n_h, C_out)
    mean = jnp.sum(s_t, axis=(0, 1)) / M_pix                      # (C_out,)
    m_t = s_t / n_t
    var = (jnp.sum(css_t, axis=(0, 1))
           + n_t * jnp.sum((m_t - mean) ** 2, axis=(0, 1))) / M_pix
    var = jnp.maximum(var, 0.0)                                   # biased (training)
    scale_c = gamma.astype(jnp.float32) * lax.rsqrt(var + BN_EPS)
    shift_c = beta.astype(jnp.float32) - mean * scale_c

    # --- phase 2: lane-dense normalize + ReLU over (B*H_out, W_out*C_out), in place ---
    L = W_out * C_out                                             # 128 for the test case
    M2 = B * H_out
    y2 = y.reshape(M2, L)                                         # contiguous, free
    scale_row = jnp.tile(scale_c, W_out).reshape(1, L)
    shift_row = jnp.tile(shift_c, W_out).reshape(1, L)

    tm = _pick_phase2_rows(M2)
    out2 = pl.pallas_call(
        _bn_relu_kernel,
        out_shape=jax.ShapeDtypeStruct((M2, L), jnp.float32),
        grid=(pl.cdiv(M2, tm),),
        in_specs=[
            pl.BlockSpec((tm, L), lambda i: (i, 0)),
            pl.BlockSpec((1, L), lambda i: (0, 0)),
            pl.BlockSpec((1, L), lambda i: (0, 0)),
        ],
        out_specs=pl.BlockSpec((tm, L), lambda i: (i, 0)),
        input_output_aliases={0: 0},                              # write over y
        compiler_params=pltpu.CompilerParams(
            dimension_semantics=("parallel",),
            vmem_limit_bytes=VMEM_LIMIT,
        ),
        cost_estimate=pl.CostEstimate(
            flops=2 * M2 * L, transcendentals=0,
            bytes_accessed=4 * (2 * M2 * L + 2 * L)),
    )(y2, scale_row, shift_row)

    # Module contract is NCHW; this transpose is the only remaining layout pass
    # (an NHWC consumer could skip it).
    return out2.reshape(B, H_out, W_out, C_out).transpose(0, 3, 1, 2)


def _reference(x_nchw, weight, gamma, beta, *, stride, padding):
    """Pure-JAX reference for a correctness check."""
    y = lax.conv_general_dilated(
        x_nchw.astype(jnp.float32), weight.astype(jnp.float32),
        window_strides=(stride, stride),
        padding=[(padding, padding), (padding, padding)],
        dimension_numbers=("NCHW", "OIHW", "NCHW"))
    mean = jnp.mean(y, axis=(0, 2, 3), keepdims=True)
    var = jnp.mean((y - mean) ** 2, axis=(0, 2, 3), keepdims=True)  # biased (training)
    yn = (y - mean) * lax.rsqrt(var + BN_EPS)
    yn = yn * gamma.reshape(1, -1, 1, 1) + beta.reshape(1, -1, 1, 1)
    return jnp.maximum(yn, 0.0)


if __name__ == "__main__":
    # Small ConvBlock: in_channels=4, out_channels=8, kernel_size=3, stride=1, padding=1.
    B, C_in, H, W = 2, 4, 16, 16
    C_out, K, stride, padding = 8, 3, 1, 1

    key = jax.random.PRNGKey(0)
    kx, kw, kg, kb = jax.random.split(key, 4)
    x = jax.random.normal(kx, (B, C_in, H, W), dtype=jnp.float32)

    fan_in = C_in * K * K
    weight = jax.random.normal(kw, (C_out, C_in, K, K), dtype=jnp.float32) / np.sqrt(fan_in)
    # Non-trivial affine params to exercise the full BN path (still deterministic).
    gamma = 0.5 + jax.random.uniform(kg, (C_out,), dtype=jnp.float32)
    beta = 0.1 * jax.random.normal(kb, (C_out,), dtype=jnp.float32)

    fwd = jax.jit(functools.partial(conv_block_forward, stride=stride, padding=padding))
    out = fwd(x, weight, gamma, beta)
    jax.block_until_ready(out)

    ref = _reference(x, weight, gamma, beta, stride=stride, padding=padding)
    np.testing.assert_allclose(np.asarray(out), np.asarray(ref), atol=1e-4, rtol=1e-4)
    print("KERNEL_OK")
</pallas_src>

<mosaic_0001>
module attributes {stable_mosaic.version = 11 : i64} {
  func.func @_conv_stats_kernel(%arg0: i32, %arg1: i32, %arg2: memref<1x18x18x4xf32, #tpu.memory_space<vmem>>, %arg3: memref<36x8xf32, #tpu.memory_space<vmem>>, %arg4: memref<1x256x8xf32, #tpu.memory_space<vmem>>, %arg5: memref<1x1x8x8xf32, #tpu.memory_space<vmem>>, %arg6: memref<1x1x8x8xf32, #tpu.memory_space<vmem>>) attributes {dimension_semantics = [#tpu.dimension_semantics<parallel>, #tpu.dimension_semantics<parallel>], iteration_bounds = array<i64: 2, 1>, scalar_prefetch = 0 : i64, scratch_operands = 0 : i64, tpu.core_type = #tpu.core_type<tc>, window_params = [{transform_indices = @transform_0, window_bounds = array<i64: 1, 18, 18, 4>}, {pipeline_mode = #tpu.pipeline_mode<synchronous>, transform_indices = @transform_1, window_bounds = array<i64: 36, 8>}, {transform_indices = @transform_2, window_bounds = array<i64: 1, 256, 8>}, {transform_indices = @transform_3, window_bounds = array<i64: 1, 1, 8, 8>}, {transform_indices = @transform_4, window_bounds = array<i64: 1, 1, 8, 8>}]} {
    %c16_i32 = arith.constant 16 : i32
    %0 = arith.muli %arg1, %c16_i32 : i32
    %c1_i32 = arith.constant 1 : i32
    %1 = arith.muli %0, %c1_i32 : i32
    %c0_i32 = arith.constant 0 : i32
    %2 = arith.addi %1, %c0_i32 : i32
    %c0 = arith.constant 0 : index
    %3 = arith.index_cast %2 : i32 to index
    %c0_0 = arith.constant 0 : index
    %c0_1 = arith.constant 0 : index
    %4 = vector.load %arg2[%c0, %3, %c0_0, %c0_1] : memref<1x18x18x4xf32, #tpu.memory_space<vmem>>, vector<1x16x16x4xf32>
    %5 = vector.shape_cast %4 : vector<1x16x16x4xf32> to vector<16x16x4xf32>
    %6 = vector.shape_cast %5 : vector<16x16x4xf32> to vector<256x4xf32>
    %c0_i32_2 = arith.constant 0 : i32
    %7 = arith.addi %1, %c0_i32_2 : i32
    %c0_3 = arith.constant 0 : index
    %8 = arith.index_cast %7 : i32 to index
    %c1 = arith.constant 1 : index
    %c0_4 = arith.constant 0 : index
    %9 = vector.load %arg2[%c0_3, %8, %c1, %c0_4] : memref<1x18x18x4xf32, #tpu.memory_space<vmem>>, vector<1x16x16x4xf32>
    %10 = vector.shape_cast %9 : vector<1x16x16x4xf32> to vector<16x16x4xf32>
    %11 = vector.shape_cast %10 : vector<16x16x4xf32> to vector<256x4xf32>
    %c0_i32_5 = arith.constant 0 : i32
    %12 = arith.addi %1, %c0_i32_5 : i32
    %c0_6 = arith.constant 0 : index
    %13 = arith.index_cast %12 : i32 to index
    %c2 = arith.constant 2 : index
    %c0_7 = arith.constant 0 : index
    %14 = vector.load %arg2[%c0_6, %13, %c2, %c0_7] : memref<1x18x18x4xf32, #tpu.memory_space<vmem>>, vector<1x16x16x4xf32>
    %15 = vector.shape_cast %14 : vector<1x16x16x4xf32> to vector<16x16x4xf32>
    %16 = vector.shape_cast %15 : vector<16x16x4xf32> to vector<256x4xf32>
    %c1_i32_8 = arith.constant 1 : i32
    %17 = arith.addi %1, %c1_i32_8 : i32
    %c0_9 = arith.constant 0 : index
    %18 = arith.index_cast %17 : i32 to index
    %c0_10 = arith.constant 0 : index
    %c0_11 = arith.constant 0 : index
    %19 = vector.load %arg2[%c0_9, %18, %c0_10, %c0_11] : memref<1x18x18x4xf32, #tpu.memory_space<vmem>>, vector<1x16x16x4xf32>
    %20 = vector.shape_cast %19 : vector<1x16x16x4xf32> to vector<16x16x4xf32>
    %21 = vector.shape_cast %20 : vector<16x16x4xf32> to vector<256x4xf32>
    %c1_i32_12 = arith.constant 1 : i32
    %22 = arith.addi %1, %c1_i32_12 : i32
    %c0_13 = arith.constant 0 : index
    %23 = arith.index_cast %22 : i32 to index
    %c1_14 = arith.constant 1 : index
    %c0_15 = arith.constant 0 : index
    %24 = vector.load %arg2[%c0_13, %23, %c1_14, %c0_15] : memref<1x18x18x4xf32, #tpu.memory_space<vmem>>, vector<1x16x16x4xf32>
    %25 = vector.shape_cast %24 : vector<1x16x16x4xf32> to vector<16x16x4xf32>
    %26 = vector.shape_cast %25 : vector<16x16x4xf32> to vector<256x4xf32>
    %c1_i32_16 = arith.constant 1 : i32
    %27 = arith.addi %1, %c1_i32_16 : i32
    %c0_17 = arith.constant 0 : index
    %28 = arith.index_cast %27 : i32 to index
    %c2_18 = arith.constant 2 : index
    %c0_19 = arith.constant 0 : index
    %29 = vector.load %arg2[%c0_17, %28, %c2_18, %c0_19] : memref<1x18x18x4xf32, #tpu.memory_space<vmem>>, vector<1x16x16x4xf32>
    %30 = vector.shape_cast %29 : vector<1x16x16x4xf32> to vector<16x16x4xf32>
    %31 = vector.shape_cast %30 : vector<16x16x4xf32> to vector<256x4xf32>
    %c2_i32 = arith.constant 2 : i32
    %32 = arith.addi %1, %c2_i32 : i32
    %c0_20 = arith.constant 0 : index
    %33 = arith.index_cast %32 : i32 to index
    %c0_21 = arith.constant 0 : index
    %c0_22 = arith.constant 0 : index
    %34 = vector.load %arg2[%c0_20, %33, %c0_21, %c0_22] : memref<1x18x18x4xf32, #tpu.memory_space<vmem>>, vector<1x16x16x4xf32>
    %35 = vector.shape_cast %34 : vector<1x16x16x4xf32> to vector<16x16x4xf32>
    %36 = vector.shape_cast %35 : vector<16x16x4xf32> to vector<256x4xf32>
    %c2_i32_23 = arith.constant 2 : i32
    %37 = arith.addi %1, %c2_i32_23 : i32
    %c0_24 = arith.constant 0 : index
    %38 = arith.index_cast %37 : i32 to index
    %c1_25 = arith.constant 1 : index
    %c0_26 = arith.constant 0 : index
    %39 = vector.load %arg2[%c0_24, %38, %c1_25, %c0_26] : memref<1x18x18x4xf32, #tpu.memory_space<vmem>>, vector<1x16x16x4xf32>
    %40 = vector.shape_cast %39 : vector<1x16x16x4xf32> to vector<16x16x4xf32>
    %41 = vector.shape_cast %40 : vector<16x16x4xf32> to vector<256x4xf32>
    %c2_i32_27 = arith.constant 2 : i32
    %42 = arith.addi %1, %c2_i32_27 : i32
    %c0_28 = arith.constant 0 : index
    %43 = arith.index_cast %42 : i32 to index
    %c2_29 = arith.constant 2 : index
    %c0_30 = arith.constant 0 : index
    %44 = vector.load %arg2[%c0_28, %43, %c2_29, %c0_30] : memref<1x18x18x4xf32, #tpu.memory_space<vmem>>, vector<1x16x16x4xf32>
    %45 = vector.shape_cast %44 : vector<1x16x16x4xf32> to vector<16x16x4xf32>
    %46 = vector.shape_cast %45 : vector<16x16x4xf32> to vector<256x4xf32>
    %47 = tpu.concatenate %6, %11, %16, %21, %26, %31, %36, %41, %46 in 1 : vector<256x4xf32>, vector<256x4xf32>, vector<256x4xf32>, vector<256x4xf32>, vector<256x4xf32>, vector<256x4xf32>, vector<256x4xf32>, vector<256x4xf32>, vector<256x4xf32> -> vector<256x36xf32>
    %c0_31 = arith.constant 0 : index
    %c0_32 = arith.constant 0 : index
    %48 = vector.load %arg3[%c0_31, %c0_32] : memref<36x8xf32, #tpu.memory_space<vmem>>, vector<36x8xf32>
    %cst = arith.constant dense<0.000000e+00> : vector<256x8xf32>
    %49 = tpu.matmul %47, %48, %cst {dimension_numbers = #tpu.dot_dimension_numbers<[1], [0], [0], [1], [0, 0, 1, 1], [], []>} : vector<256x36xf32>, vector<36x8xf32>, vector<256x8xf32> -> vector<256x8xf32>
    %c0_33 = arith.constant 0 : index
    %c0_34 = arith.constant 0 : index
    %c0_35 = arith.constant 0 : index
    %50 = vector.load %arg4[%c0_33, %c0_34, %c0_35] : memref<1x256x8xf32, #tpu.memory_space<vmem>>, vector<1x256x8xf32>
    %51 = vector.shape_cast %50 : vector<1x256x8xf32> to vector<256x8xf32>
    %52 = vector.shape_cast %49 : vector<256x8xf32> to vector<1x256x8xf32>
    tpu.vector_store %arg4[%c0_33, %c0_34, %c0_35], %52 {strides = array<i32>} : memref<1x256x8xf32, #tpu.memory_space<vmem>>, vector<1x256x8xf32>,
    %cst_36 = arith.constant dense<0.000000e+00> : vector<8xf32>
    %53 = vector.multi_reduction <add>, %49, %cst_36 [0] : vector<256x8xf32> to vector<8xf32>
    %54 = vector.shape_cast %53 : vector<8xf32> to vector<1x8xf32>
    %cst_37 = arith.constant 3.906250e-03 : f32
    %55 = vector.broadcast %cst_37 : f32 to vector<1x8xf32>
    %56 = arith.mulf %54, %55 : vector<1x8xf32>
    %57 = vector.broadcast %56 : vector<1x8xf32> to vector<256x8xf32>
    %58 = arith.subf %49, %57 : vector<256x8xf32>
    %59 = arith.mulf %58, %58 : vector<256x8xf32>
    %cst_38 = arith.constant dense<0.000000e+00> : vector<8xf32>
    %60 = vector.multi_reduction <add>, %59, %cst_38 [0] : vector<256x8xf32> to vector<8xf32>
    %61 = vector.shape_cast %60 : vector<8xf32> to vector<1x8xf32>
    %62 = vector.shape_cast %54 : vector<1x8xf32> to vector<1x8xf32>
    %63 = vector.broadcast %62 : vector<1x8xf32> to vector<8x8xf32>
    %c0_39 = arith.constant 0 : index
    %c0_40 = arith.constant 0 : index
    %c0_41 = arith.constant 0 : index
    %c0_42 = arith.constant 0 : index
    %64 = vector.load %arg5[%c0_39, %c0_40, %c0_41, %c0_42] : memref<1x1x8x8xf32, #tpu.memory_space<vmem>>, vector<1x1x8x8xf32>
    %65 = vector.shape_cast %64 : vector<1x1x8x8xf32> to vector<8x8xf32>
    %66 = vector.shape_cast %63 : vector<8x8xf32> to vector<1x1x8x8xf32>
    tpu.vector_store %arg5[%c0_39, %c0_40, %c0_41, %c0_42], %66 {strides = array<i32>} : memref<1x1x8x8xf32, #tpu.memory_space<vmem>>, vector<1x1x8x8xf32>,
    %67 = vector.shape_cast %61 : vector<1x8xf32> to vector<1x8xf32>
    %68 = vector.broadcast %67 : vector<1x8xf32> to vector<8x8xf32>
    %c0_43 = arith.constant 0 : index
    %c0_44 = arith.constant 0 : index
    %c0_45 = arith.constant 0 : index
    %c0_46 = arith.constant 0 : index
    %69 = vector.load %arg6[%c0_43, %c0_44, %c0_45, %c0_46] : memref<1x1x8x8xf32, #tpu.memory_space<vmem>>, vector<1x1x8x8xf32>
    %70 = vector.shape_cast %69 : vector<1x1x8x8xf32> to vector<8x8xf32>
    %71 = vector.shape_cast %68 : vector<8x8xf32> to vector<1x1x8x8xf32>
    tpu.vector_store %arg6[%c0_43, %c0_44, %c0_45, %c0_46], %71 {strides = array<i32>} : memref<1x1x8x8xf32, #tpu.memory_space<vmem>>, vector<1x1x8x8xf32>,
    return
  }
  func.func @transform_0(%arg0: i32, %arg1: i32) -> (i32, i32, i32, i32) {
    %c0_i32 = arith.constant 0 : i32
    %c0_i32_0 = arith.constant 0 : i32
    %c0_i32_1 = arith.constant 0 : i32
    %c0_i32_2 = arith.constant 0 : i32
    return %arg0, %c0_i32, %c0_i32_0, %c0_i32_1 : i32, i32, i32, i32
  }
  func.func @transform_1(%arg0: i32, %arg1: i32) -> (i32, i32) {
    %c0_i32 = arith.constant 0 : i32
    %c0_i32_0 = arith.constant 0 : i32
    %c0_i32_1 = arith.constant 0 : i32
    return %c0_i32, %c0_i32_0 : i32, i32
  }
  func.func @transform_2(%arg0: i32, %arg1: i32) -> (i32, i32, i32) {
    %c0_i32 = arith.constant 0 : i32
    %c0_i32_0 = arith.constant 0 : i32
    return %arg0, %arg1, %c0_i32 : i32, i32, i32
  }
  func.func @transform_3(%arg0: i32, %arg1: i32) -> (i32, i32, i32, i32) {
    %c0_i32 = arith.constant 0 : i32
    %c0_i32_0 = arith.constant 0 : i32
    %c0_i32_1 = arith.constant 0 : i32
    return %arg0, %arg1, %c0_i32, %c0_i32_0 : i32, i32, i32, i32
  }
  func.func @transform_4(%arg0: i32, %arg1: i32) -> (i32, i32, i32, i32) {
    %c0_i32 = arith.constant 0 : i32
    %c0_i32_0 = arith.constant 0 : i32
    %c0_i32_1 = arith.constant 0 : i32
    return %arg0, %arg1, %c0_i32, %c0_i32_0 : i32, i32, i32, i32
  }
}

module attributes {stable_mosaic.version = 11 : i64} {
  func.func @_bn_relu_kernel(%arg0: i32, %arg1: memref<32x128xf32, #tpu.memory_space<vmem>>, %arg2: memref<1x128xf32, #tpu.memory_space<vmem>>, %arg3: memref<1x128xf32, #tpu.memory_space<vmem>>, %arg4: memref<32x128xf32, #tpu.memory_space<vmem>>) attributes {dimension_semantics = [#tpu.dimension_semantics<parallel>], iteration_bounds = array<i64: 1>, scalar_prefetch = 0 : i64, scratch_operands = 0 : i64, tpu.core_type = #tpu.core_type<tc>, window_params = [{transform_indices = @transform_0, window_bounds = array<i64: 32, 128>}, {pipeline_mode = #tpu.pipeline_mode<synchronous>, transform_indices = @transform_1, window_bounds = array<i64: 1, 128>}, {pipeline_mode = #tpu.pipeline_mode<synchronous>, transform_indices = @transform_2, window_bounds = array<i64: 1, 128>}, {transform_indices = @transform_3, window_bounds = array<i64: 32, 128>}]} {
    %c0 = arith.constant 0 : index
    %c0_0 = arith.constant 0 : index
    %0 = vector.load %arg1[%c0, %c0_0] : memref<32x128xf32, #tpu.memory_space<vmem>>, vector<32x128xf32>
    %c0_1 = arith.constant 0 : index
    %c0_2 = arith.constant 0 : index
    %1 = vector.load %arg2[%c0_1, %c0_2] : memref<1x128xf32, #tpu.memory_space<vmem>>, vector<1x128xf32>
    %2 = vector.broadcast %1 : vector<1x128xf32> to vector<32x128xf32>
    %3 = arith.mulf %0, %2 : vector<32x128xf32>
    %c0_3 = arith.constant 0 : index
    %c0_4 = arith.constant 0 : index
    %4 = vector.load %arg3[%c0_3, %c0_4] : memref<1x128xf32, #tpu.memory_space<vmem>>, vector<1x128xf32>
    %5 = vector.broadcast %4 : vector<1x128xf32> to vector<32x128xf32>
    %6 = arith.addf %3, %5 : vector<32x128xf32>
    %cst = arith.constant 0.000000e+00 : f32
    %7 = vector.broadcast %cst : f32 to vector<32x128xf32>
    %8 = arith.maximumf %6, %7 : vector<32x128xf32>
    %c0_5 = arith.constant 0 : index
    %c0_6 = arith.constant 0 : index
    %9 = vector.load %arg4[%c0_5, %c0_6] : memref<32x128xf32, #tpu.memory_space<vmem>>, vector<32x128xf32>
    tpu.vector_store %arg4[%c0_5, %c0_6], %8 {strides = array<i32>} : memref<32x128xf32, #tpu.memory_space<vmem>>, vector<32x128xf32>,
    return
  }
  func.func @transform_0(%arg0: i32) -> (i32, i32) {
    %c0_i32 = arith.constant 0 : i32
    %c0_i32_0 = arith.constant 0 : i32
    return %arg0, %c0_i32 : i32, i32
  }
  func.func @transform_1(%arg0: i32) -> (i32, i32) {
    %c0_i32 = arith.constant 0 : i32
    %c0_i32_0 = arith.constant 0 : i32
    %c0_i32_1 = arith.constant 0 : i32
    return %c0_i32, %c0_i32_0 : i32, i32
  }
  func.func @transform_2(%arg0: i32) -> (i32, i32) {
    %c0_i32 = arith.constant 0 : i32
    %c0_i32_0 = arith.constant 0 : i32
    %c0_i32_1 = arith.constant 0 : i32
    return %c0_i32, %c0_i32_0 : i32, i32
  }
  func.func @transform_3(%arg0: i32) -> (i32, i32) {
    %c0_i32 = arith.constant 0 : i32
    %c0_i32_0 = arith.constant 0 : i32
    return %arg0, %c0_i32 : i32, i32
  }
}

</mosaic_0001>

<llo_original>
// kernel: tile.18
$region0: #{tile.18}
  #allocation0 [shape = 's32[1]{0}', space=sflag, size = 0x4, scoped, tag = 'scoped memory for tile.18']
  %s0 = inlined_call_operand.vmem [shape: f32[8], index: 0, kind: input, shape index: {}]
  %s1 = inlined_call_operand.vmem [shape: f32[16,8], index: 1, kind: output, shape index: {}]
  // Predicated region
  $region2: #{tile.18} parent=0 // pred_check
    _
  $region3: #{tile.18} parent=0 // pred_check_branch
    %3 = sbr.rel (0) target = $region5
  $region4: #{tile.18} parent=0 // pred_region
    _
  $region5: #{tile.18} parent=0 // pred_fallthru
    _
  %v4 = vld [vmem:[%s0] ss:$0 sm:$0xff]
  %5 = vst [vmem:[%s1] sm:$0xff] %v4
  %s6 = scalar_lea.vmem %s1, 8
  %7 = vst [vmem:[%s6] sm:$0xff] %v4

// kernel: tile.19
$region0: #{tile.19}
  %s0 = inlined_call_operand.vmem [shape: f32[16,8], index: 0, kind: input, shape index: {}]
  %s1 = inlined_call_operand.vmem [shape: f32[1,128], index: 1, kind: output, shape index: {}]
  $region1: #{tile.19} parent=0
    #allocation0 [shape = 'u8[4096]{0}', space=vmem, size = 0x1000, scoped, tag = 'scoped mem for output reshape']
    %v2 = vld [vmem:[%s0] sm:$0x1]
    %vm3 = vcmask 64512
    %4 = vst.msk [vmem:[#allocation0] sm:$0x1] %vm3, %v2
    %s5 = scalar_lea.vmem %s0, 15
    %v6 = vld [vmem:[%s5] sm:$0x1]
    %7 = vrot.lane.b32.xlu0 %v6, 120
    %v8 = vpop.permute.xlu0 %7
    %vm9 = vcmask 1048512
    %10 = vst.msk [vmem:[#allocation0] sm:$0x1] %vm9, %v8
    %s11 = scalar_lea.vmem %s0, 14
    %v12 = vld [vmem:[%s11] sm:$0x1]
    %13 = vrot.lane.b32.xlu0 %v12, 112
    %v14 = vpop.permute.xlu0 %13
    %vm15 = vcmask 982912
    %16 = vst.msk [vmem:[#allocation0] sm:$0x1] %vm15, %v14
    %s17 = scalar_lea.vmem %s0, 13
    %v18 = vld [vmem:[%s17] sm:$0x1]
    %19 = vrot.lane.b32.xlu0 %v18, 104
    %v20 = vpop.permute.xlu0 %19
    %vm21 = vcmask 917312
    %22 = vst.msk [vmem:[#allocation0] sm:$0x1] %vm21, %v20
    %s23 = scalar_lea.vmem %s0, 12
    %v24 = vld [vmem:[%s23] sm:$0x1]
    %25 = vrot.lane.b32.xlu0 %v24, 96
    %v26 = vpop.permute.xlu0 %25
    %vm27 = vcmask 851712
    %28 = vst.msk [vmem:[#allocation0] sm:$0x1] %vm27, %v26
    %s29 = scalar_lea.vmem %s0, 11
    %v30 = vld [vmem:[%s29] sm:$0x1]
    %31 = vrot.lane.b32.xlu0 %v30, 88
    %v32 = vpop.permute.xlu0 %31
    %vm33 = vcmask 786112
    %34 = vst.msk [vmem:[#allocation0] sm:$0x1] %vm33, %v32
    %s35 = scalar_lea.vmem %s0, 10
    %v36 = vld [vmem:[%s35] sm:$0x1]
    %37 = vrot.lane.b32.xlu0 %v36, 80
    %v38 = vpop.permute.xlu0 %37
    %vm39 = vcmask 720512
    %40 = vst.msk [vmem:[#allocation0] sm:$0x1] %vm39, %v38
    %s41 = scalar_lea.vmem %s0, 9
    %v42 = vld [vmem:[%s41] sm:$0x1]
    %43 = vrot.lane.b32.xlu0 %v42, 72
    %v44 = vpop.permute.xlu0 %43
    %vm45 = vcmask 654912
    %46 = vst.msk [vmem:[#allocation0] sm:$0x1] %vm45, %v44
    %s47 = scalar_lea.vmem %s0, 8
    %v48 = vld [vmem:[%s47] sm:$0x1]
    %49 = vrot.lane.b32.xlu0 %v48, 64
    %v50 = vpop.permute.xlu0 %49
    %vm51 = vcmask 589312
    %52 = vst.msk [vmem:[#allocation0] sm:$0x1] %vm51, %v50
    %s53 = scalar_lea.vmem %s0, 7
    %v54 = vld [vmem:[%s53] sm:$0x1]
    %55 = vrot.lane.b32.xlu0 %v54, 56
    %v56 = vpop.permute.xlu0 %55
    %vm57 = vcmask 523712
    %58 = vst.msk [vmem:[#allocation0] sm:$0x1] %vm57, %v56
    %s59 = scalar_lea.vmem %s0, 6
    %v60 = vld [vmem:[%s59] sm:$0x1]
    %61 = vrot.lane.b32.xlu0 %v60, 48
    %v62 = vpop.permute.xlu0 %61
    %vm63 = vcmask 458112
    %64 = vst.msk [vmem:[#allocation0] sm:$0x1] %vm63, %v62
    %s65 = scalar_lea.vmem %s0, 5
    %v66 = vld [vmem:[%s65] sm:$0x1]
    %67 = vrot.lane.b32.xlu0 %v66, 40
    %v68 = vpop.permute.xlu0 %67
    %vm69 = vcmask 392512
    %70 = vst.msk [vmem:[#allocation0] sm:$0x1] %vm69, %v68
    %s71 = scalar_lea.vmem %s0, 4
    %v72 = vld [vmem:[%s71] sm:$0x1]
    %73 = vrot.lane.b32.xlu0 %v72, 32
    %v74 = vpop.permute.xlu0 %73
    %vm75 = vcmask 326912
    %76 = vst.msk [vmem:[#allocation0] sm:$0x1] %vm75, %v74
    %s77 = scalar_lea.vmem %s0, 3
    %v78 = vld [vmem:[%s77] sm:$0x1]
    %79 = vrot.lane.b32.xlu0 %v78, 24
    %v80 = vpop.permute.xlu0 %79
    %vm81 = vcmask 261312
    %82 = vst.msk [vmem:[#allocation0] sm:$0x1] %vm81, %v80
    %s83 = scalar_lea.vmem %s0, 2
    %v84 = vld [vmem:[%s83] sm:$0x1]
    %85 = vrot.lane.b32.xlu0 %v84, 16
    %v86 = vpop.permute.xlu0 %85
    %vm87 = vcmask 195712
    %88 = vst.msk [vmem:[#allocation0] sm:$0x1] %vm87, %v86
    %s89 = scalar_lea.vmem %s0, 1
    %v90 = vld [vmem:[%s89] sm:$0x1]
    %91 = vrot.lane.b32.xlu0 %v90, 8
    %v92 = vpop.permute.xlu0 %91
    %vm93 = vcmask 130112
    %94 = vst.msk [vmem:[#allocation0] sm:$0x1] %vm93, %v92
    %s96 = sshllo.u32 0, 1
    %v98 = vld [vmem:[#allocation0] sm:%s96]
    %s99 = sshllo.u32 0, 1
    %100 = vst [vmem:[%s1] sm:%s99] %v98

// kernel: conv_block_forward.3
$region0: #{conv_block_forward.3}
  #allocation0 [shape = 'u32[]', space=smem, size = 0x4, offset = 0x4, fixed_abs, tag = 'smem constant byte address 0x4 - core index']
  #allocation1 [shape = 'u32[144,128]{1,0:T(1,128)}', space=vmem, size = 0x12000, scoped, tag = 'internal scratch']
  %s0 = inlined_call_operand.vmem [shape: f32[32,128], index: 0, kind: input, shape index: {}, may-alias: {0,3}]
  %s1 = inlined_call_operand.vmem [shape: f32[1,128], index: 1, kind: input, shape index: {}]
  %s2 = inlined_call_operand.vmem [shape: f32[1,128], index: 2, kind: input, shape index: {}]
  %s3 = inlined_call_operand.vmem [shape: f32[32,128], index: 3, kind: output, shape index: {}, may-alias: {0,3}]
  %s4 = sld [smem:[#allocation0]]
  $region22: #{conv_block_forward.3} parent=0
    _
  %s6 = ssub.s32 1, %s4
  %s7 = scalar_select 0, %s6, %s4
  // Predicated region
  $region2: #{conv_block_forward.3} parent=0 // pred_check
    _
  $region3: #{conv_block_forward.3} parent=0 // pred_check_branch
    %9 = sbr.rel (0) target = $region5
  $region4: #{conv_block_forward.3} parent=0 // pred_region
    _
  $region5: #{conv_block_forward.3} parent=0 // pred_fallthru
    _
  // Predicated region
  $region6: #{conv_block_forward.3} parent=0 // pred_check
    _
  $region7: #{conv_block_forward.3} parent=0 // pred_check_branch
    %11 = sbr.rel (0) target = $region9
  $region8: #{conv_block_forward.3} parent=0 // pred_region
    _
  $region9: #{conv_block_forward.3} parent=0 // pred_fallthru
    _
  // Predicated region
  $region10: #{conv_block_forward.3} parent=0 // pred_check
    _
  $region11: #{conv_block_forward.3} parent=0 // pred_check_branch
    %13 = sbr.rel (0) target = $region13
  $region12: #{conv_block_forward.3} parent=0 // pred_region
    _
  $region13: #{conv_block_forward.3} parent=0 // pred_fallthru
    _
  %v14 = vld [vmem:[%s0] sm:$0xff]
  %v15 = vld [vmem:[%s0 + $0x8] sm:$0xff]
  %v16 = vld [vmem:[%s0 + $0x10] sm:$0xff]
  %v17 = vld [vmem:[%s0 + $0x18] sm:$0xff]
  %v18 = vld [vmem:[%s1] sm:$0x1]
  %v20 = vlaneseq
  %v21 = vshrl.u32 %v20, 7
  %v22 = vsub.s32 0, %v21
  %v23 = vrot.slane %v18, %v22
  %v25 = vmul.f32 %v14, %v23
  %v26 = vmul.f32 %v15, %v23
  %v27 = vmul.f32 %v16, %v23
  %v28 = vmul.f32 %v17, %v23
  %v29 = vld [vmem:[%s2] sm:$0x1]
  %v31 = vlaneseq
  %v32 = vshrl.u32 %v31, 7
  %v33 = vsub.s32 0, %v32
  %v34 = vrot.slane %v29, %v33
  %v36 = vadd.f32 %v25, %v34
  %v37 = vadd.f32 %v26, %v34
  %v38 = vadd.f32 %v27, %v34
  %v39 = vadd.f32 %v28, %v34
  %v40 = vmax.f32 %v36, 0.0
  %v41 = vmax.f32 %v37, 0.0
  %v42 = vmax.f32 %v38, 0.0
  %v43 = vmax.f32 %v39, 0.0
  %44 = vst [vmem:[%s3] sm:$0xff] %v40
  %45 = vst [vmem:[%s3 + $0x8] sm:$0xff] %v41
  %46 = vst [vmem:[%s3 + $0x10] sm:$0xff] %v42
  %47 = vst [vmem:[%s3 + $0x18] sm:$0xff] %v43
  // Predicated region
  $region14: #{conv_block_forward.3} parent=0 // pred_check
    _
  $region15: #{conv_block_forward.3} parent=0 // pred_check_branch
    %49 = sbr.rel (0) target = $region17
  $region16: #{conv_block_forward.3} parent=0 // pred_region
    _
  $region17: #{conv_block_forward.3} parent=0 // pred_fallthru
    _
  // Predicated region
  $region18: #{conv_block_forward.3} parent=0 // pred_check
    _
  $region19: #{conv_block_forward.3} parent=0 // pred_check_branch
    %51 = sbr.rel (0) target = $region21
  $region20: #{conv_block_forward.3} parent=0 // pred_region
    _
  $region21: #{conv_block_forward.3} parent=0 // pred_fallthru
    _

// kernel: conv_block_forward.2
$region0: #{conv_block_forward.2}
  #allocation0 [shape = 'u32[]', space=smem, size = 0x4, offset = 0x4, fixed_abs, tag = 'smem constant byte address 0x4 - core index']
  #allocation1 [shape = 'u32[144,128]{1,0:T(1,128)}', space=vmem, size = 0x12000, scoped, tag = 'internal scratch']
  %s0 = inlined_call_operand.vmem [shape: f32[2,18,18,4], index: 0, kind: input, shape index: {}]
  %s1 = inlined_call_operand.vmem [shape: f32[36,8], index: 1, kind: input, shape index: {}]
  %s2 = inlined_call_operand.vmem [shape: f32[2,256,8], index: 2, kind: output, shape index: {0}]
  %s3 = inlined_call_operand.vmem [shape: f32[2,1,8,8], index: 3, kind: output, shape index: {1}]
  %s4 = inlined_call_operand.vmem [shape: f32[2,1,8,8], index: 4, kind: output, shape index: {2}]
  %5 = xla_tuple %s2, %s3, %s4
  %s6 = sld [smem:[#allocation0]]
  $region57: #{conv_block_forward.2} parent=0
    _
  %s8 = ssub.s32 1, %s6
  %s9 = scalar_select 0, %s8, %s6
  loop: start=0, step=1, limit=4
  $region2: #{conv_block_forward.2} parent=0 // loop_pre_header
    _
  $region3: #{conv_block_forward.2} parent=0 // loop_header
    %s11 = sphi 0, %s15
    %p12 = scmp.ge.s32.totalorder %s11, 4
    %s18 = sphi 0, %s30
    %s19 = sphi 0, %s26
    %s20 = sphi 0, %s18
    %s21 = sphi 0, %s19
    %s22 = sphi 0, %s20
    %s23 = sphi 0, %s21
    %s33 = sphi 0, %s35
    %s36 = sphi 0, %s33
    %s37 = sphi 0, %s36
    %s53 = sphi 0, %s37
    %s57 = sphi 0, %s57
    %s59 = sphi 0, %s57
    %s60 = sphi 0, %s59
    %s74 = sphi 0, %s60
    %s82 = sphi 0, %s84
    %s85 = sphi 0, %s82
    %s86 = sphi 0, %s85
    %s102 = sphi 0, %s86
    %s110 = sphi 0, %s112
    %s113 = sphi 0, %s110
    %s114 = sphi 0, %s113
    %s130 = sphi 0, %s114
    %s138 = sphi 0, %s140
    %s141 = sphi 0, %s138
    %s142 = sphi 0, %s141
    %s158 = sphi 0, %s142
  $region4: #{conv_block_forward.2} parent=0 // loop_header_branch
    %14 = sbr.rel (%p12) target = $region8
  $region5: #{conv_block_forward.2} parent=0 // loop_body
    %s16 = ssub.s32 %s11, 1
    %s17 = ssub.s32 %s11, 2
    %s24 = sadd.s32 1, %s19
    %p25 = scmp.ge.s32.totalorder %s24, 1
    %s26 = scalar_select %p25, 0, %s24
    %s27 = sadd.s32 1, %s18
    %s28 = scalar_select %p25, %s27, %s18
    %p29 = scmp.ge.s32.totalorder %s28, 2
    %s30 = scalar_select %p29, 0, %s28
    %s31 = ssub.s32 %s18, %s30
    %p32 = scmp.eq.s32.totalorder %s31, 0
    %s34 = sadd.s32 %s33, 1
    %s35 = scalar_select %p32, %s33, %s34
    %p38 = pneg %p32
    %p39 = scmp.eq.s32.totalorder %s11, 1
    %p40 = por %p38, %p39
    %p41 = scmp.ne.s32.totalorder %s33, %s36
    %p42 = scmp.eq.s32.totalorder %s11, 0
    %p43 = por %p41, %p42
    %p44 = scmp.ne.s32.totalorder %s33, %s36
    %p45 = scmp.eq.s32.totalorder %s16, 1
    %p46 = por %p44, %p45
    %p47 = scmp.ne.s32.totalorder %s36, %s37
    %p48 = scmp.eq.s32.totalorder %s16, 0
    %p49 = por %p47, %p48
    %p50 = scmp.ne.s32.totalorder %s36, %s37
    %p51 = scmp.eq.s32.totalorder %s17, 1
    %p52 = por %p50, %p51
    %p54 = scmp.ne.s32.totalorder %s37, %s53
    %p55 = scmp.eq.s32.totalorder %s17, 0
    %p56 = por %p54, %p55
    %s58 = sadd.s32 %s57, 1
    %p61 = scmp.eq.s32.totalorder %s11, 1
    %p62 = scmp.ne.s32.totalorder %s57, %s59
    %p63 = scmp.eq.s32.totalorder %s11, 0
    %p64 = por %p62, %p63
    %p65 = scmp.ne.s32.totalorder %s57, %s59
    %p66 = scmp.eq.s32.totalorder %s16, 1
    %p67 = por %p65, %p66
    %p68 = scmp.ne.s32.totalorder %s59, %s60
    %p69 = scmp.eq.s32.totalorder %s16, 0
    %p70 = por %p68, %p69
    %p71 = scmp.ne.s32.totalorder %s59, %s60
    %p72 = scmp.eq.s32.totalorder %s17, 1
    %p73 = por %p71, %p72
    %p75 = scmp.ne.s32.totalorder %s60, %s74
    %p76 = scmp.eq.s32.totalorder %s17, 0
    %p77 = por %p75, %p76
    %s78 = ssub.s32 %s18, %s30
    %s79 = ssub.s32 %s19, %s26
    %s80 = sor.u32 %s78, %s79
    %p81 = scmp.eq.s32.totalorder %s80, 0
    %s83 = sadd.s32 %s82, 1
    %s84 = scalar_select %p81, %s82, %s83
    %p87 = pneg %p81
    %p88 = scmp.eq.s32.totalorder %s11, 1
    %p89 = por %p87, %p88
    %p90 = scmp.ne.s32.totalorder %s82, %s85
    %p91 = scmp.eq.s32.totalorder %s11, 0
    %p92 = por %p90, %p91
    %p93 = scmp.ne.s32.totalorder %s82, %s85
    %p94 = scmp.eq.s32.totalorder %s16, 1
    %p95 = por %p93, %p94
    %p96 = scmp.ne.s32.totalorder %s85, %s86
    %p97 = scmp.eq.s32.totalorder %s16, 0
    %p98 = por %p96, %p97
    %p99 = scmp.ne.s32.totalorder %s85, %s86
    %p100 = scmp.eq.s32.totalorder %s17, 1
    %p101 = por %p99, %p100
    %p103 = scmp.ne.s32.totalorder %s86, %s102
    %p104 = scmp.eq.s32.totalorder %s17, 0
    %p105 = por %p103, %p104
    %s106 = ssub.s32 %s18, %s30
    %s107 = ssub.s32 %s19, %s26
    %s108 = sor.u32 %s106, %s107
    %p109 = scmp.eq.s32.totalorder %s108, 0
    %s111 = sadd.s32 %s110, 1
    %s112 = scalar_select %p109, %s110, %s111
    %p115 = pneg %p109
    %p116 = scmp.eq.s32.totalorder %s11, 1
    %p117 = por %p115, %p116
    %p118 = scmp.ne.s32.totalorder %s110, %s113
    %p119 = scmp.eq.s32.totalorder %s11, 0
    %p120 = por %p118, %p119
    %p121 = scmp.ne.s32.totalorder %s110, %s113
    %p122 = scmp.eq.s32.totalorder %s16, 1
    %p123 = por %p121, %p122
    %p124 = scmp.ne.s32.totalorder %s113, %s114
    %p125 = scmp.eq.s32.totalorder %s16, 0
    %p126 = por %p124, %p125
    %p127 = scmp.ne.s32.totalorder %s113, %s114
    %p128 = scmp.eq.s32.totalorder %s17, 1
    %p129 = por %p127, %p128
    %p131 = scmp.ne.s32.totalorder %s114, %s130
    %p132 = scmp.eq.s32.totalorder %s17, 0
    %p133 = por %p131, %p132
    %s134 = ssub.s32 %s18, %s30
    %s135 = ssub.s32 %s19, %s26
    %s136 = sor.u32 %s134, %s135
    %p137 = scmp.eq.s32.totalorder %s136, 0
    %s139 = sadd.s32 %s138, 1
    %s140 = scalar_select %p137, %s138, %s139
    %p143 = pneg %p137
    %p144 = scmp.eq.s32.totalorder %s11, 1
    %p145 = por %p143, %p144
    %p146 = scmp.ne.s32.totalorder %s138, %s141
    %p147 = scmp.eq.s32.totalorder %s11, 0
    %p148 = por %p146, %p147
    %p149 = scmp.ne.s32.totalorder %s138, %s141
    %p150 = scmp.eq.s32.totalorder %s16, 1
    %p151 = por %p149, %p150
    %p152 = scmp.ne.s32.totalorder %s141, %s142
    %p153 = scmp.eq.s32.totalorder %s16, 0
    %p154 = por %p152, %p153
    %p155 = scmp.ne.s32.totalorder %s141, %s142
    %p156 = scmp.eq.s32.totalorder %s17, 1
    %p157 = por %p155, %p156
    %p159 = scmp.ne.s32.totalorder %s142, %s158
    %p160 = scmp.eq.s32.totalorder %s17, 0
    %p161 = por %p159, %p160
    %p162 = scmp.le.s32.totalorder 1, %s11
    %p163 = scmp.lt.s32.totalorder %s11, 3
    %p164 = pnand %p162, %p163
    %p165 = pneg %p164
    // Predicated region
    $region9: #{conv_block_forward.2} parent=5 // pred_check
      _
    $region10: #{conv_block_forward.2} parent=5 // pred_check_branch
      %167 = sbr.rel (%p164) target = $region12
    $region11: #{conv_block_forward.2} parent=5 // pred_region
      %s168 = ssub.s32 %s11, 1
      // Predicated region
      $region13: #{conv_block_forward.2} parent=11 // pred_check
        %p169 = pneg %p70
      $region14: #{conv_block_forward.2} parent=11 // pred_check_branch
        %171 = sbr.rel (%p169) target = $region16
      $region15: #{conv_block_forward.2} parent=11 // pred_region
        _
      $region16: #{conv_block_forward.2} parent=11 // pred_fallthru
        _
    $region12: #{conv_block_forward.2} parent=5 // pred_fallthru
      _
    %p172 = scmp.lt.s32.totalorder %s11, 2
    // Predicated region
    $region17: #{conv_block_forward.2} parent=5 // pred_check
      %p173 = pneg %p172
    $region18: #{conv_block_forward.2} parent=5 // pred_check_branch
      %175 = sbr.rel (%p173) target = $region20
    $region19: #{conv_block_forward.2} parent=5 // pred_region
      // Predicated region
      $region21: #{conv_block_forward.2} parent=19 // pred_check
        %p176 = pneg %p43
      $region22: #{conv_block_forward.2} parent=19 // pred_check_branch
        %178 = sbr.rel (%p176) target = $region24
      $region23: #{conv_block_forward.2} parent=19 // pred_region
        %p179 = scmp.lt.s32.totalorder %s18, 1
        %s180 = scalar_select %p179, %s18, 1
        %s181 = smul.addr %s180, 54
        %s182 = smul.addr %s181, 8
        %s183 = scalar_lea.vmem %s0, %s182
      $region24: #{conv_block_forward.2} parent=19 // pred_fallthru
        _
    $region20: #{conv_block_forward.2} parent=5 // pred_fallthru
      _
    %p184 = scmp.le.s32.totalorder 1, %s11
    %p185 = scmp.lt.s32.totalorder %s11, 3
    %p186 = pnand %p184, %p185
    %p187 = pneg %p186
    // Predicated region
    $region25: #{conv_block_forward.2} parent=5 // pred_check
      _
    $region26: #{conv_block_forward.2} parent=5 // pred_check_branch
      %189 = sbr.rel (%p186) target = $region28
    $region27: #{conv_block_forward.2} parent=5 // pred_region
      %s190 = ssub.s32 %s11, 1
      %p191 = scmp.lt.s32.totalorder %s20, 1
      %s192 = scalar_select %p191, %s20, 1
      %s193 = smul.addr %s192, 54
      %s194 = smul.addr %s193, 8
      %s195 = scalar_lea.vmem %s0, %s194
      %p196 = pneg %p49
      %p197 = pneg %p46
      %p198 = pneg %p70
      %p199 = pneg %p67
      %p200 = pneg %p98
      %p201 = pneg %p95
      %s202 = smul.u32 32, %s21
      %p203 = scmp.lt.s32.totalorder %s20, 1
      %s204 = scalar_select %p203, %s20, 1
      %p205 = scmp.lt.s32.totalorder %s202, 31
      %s206 = scalar_select %p205, %s202, 31
      %s207 = smul.addr %s204, 32
      %s208 = sadd.s32 %s206, %s207
      %s209 = smul.addr %s208, 8
      %s210 = scalar_lea.vmem %s2, %s209
      %p211 = pneg %p126
      %p212 = pneg %p123
      %p213 = scmp.lt.s32.totalorder %s20, 1
      %s214 = scalar_select %p213, %s20, 1
      %p215 = scmp.lt.s32.totalorder %s21, 0
      %s216 = scalar_select %p215, %s21, 0
      %s217 = sadd.s32 %s216, %s214
      %s218 = smul.addr %s217, 8
      %s219 = scalar_lea.vmem %s3, %s218
      %p220 = pneg %p154
      %p221 = pneg %p151
      %p222 = scmp.lt.s32.totalorder %s20, 1
      %s223 = scalar_select %p222, %s20, 1
      %p224 = scmp.lt.s32.totalorder %s21, 0
      %s225 = scalar_select %p224, %s21, 0
      %s226 = sadd.s32 %s225, %s223
      %s227 = smul.addr %s226, 8
      %s228 = scalar_lea.vmem %s4, %s227
      %p229 = scmp.lt.s32.totalorder %s20, 1
      %s230 = scalar_select %p229, %s20, 1
      %s231 = smul.addr %s230, 54
      %s232 = smul.addr %s231, 8
      %s233 = scalar_lea.vmem %s0, %s232
      %s234 = smul.u32 32, %s21
      %p235 = scmp.lt.s32.totalorder %s20, 1
      %s236 = scalar_select %p235, %s20, 1
      %p237 = scmp.lt.s32.totalorder %s234, 31
      %s238 = scalar_select %p237, %s234, 31
      %s239 = smul.addr %s236, 32
      %s240 = sadd.s32 %s238, %s239
      %s241 = smul.addr %s240, 8
      %s242 = scalar_lea.vmem %s2, %s241
      %s243 = smul.u32 32, %s21
      %p244 = scmp.lt.s32.totalorder %s20, 1
      %s245 = scalar_select %p244, %s20, 1
      %p246 = scmp.lt.s32.totalorder %s21, 0
      %s247 = scalar_select %p246, %s21, 0
      %s248 = sadd.s32 %s247, %s245
      %s249 = smul.addr %s248, 8
      %s250 = scalar_lea.vmem %s3, %s249
      %p251 = scmp.lt.s32.totalorder %s20, 1
      %s252 = scalar_select %p251, %s20, 1
      %p253 = scmp.lt.s32.totalorder %s21, 0
      %s254 = scalar_select %p253, %s21, 0
      %s255 = sadd.s32 %s254, %s252
      %s256 = smul.addr %s255, 8
      %s257 = scalar_lea.vmem %s4, %s256
      %s258 = smul.u32 %s21, 16
      %s259 = smul.u32 %s258, 24
      %s260 = scalar_lea.vmem %s233, %s259
      %v261 = vld [vmem:[%s260] sm:$0xff]
      %v262 = vld [vmem:[%s260 + $0x8] sm:$0xff]
      %v263 = vld [vmem:[%s260 + $0x18] sm:$0xff]
      %v264 = vld [vmem:[%s260 + $0x20] sm:$0xff]
      %v265 = vld [vmem:[%s260 + $0x30] sm:$0xff]
      %v266 = vld [vmem:[%s260 + $0x38] sm:$0xff]
      %v267 = vld [vmem:[%s260 + $0x48] sm:$0xff]
      %v268 = vld [vmem:[%s260 + $0x50] sm:$0xff]
      %v269 = vld [vmem:[%s260 + $0x60] sm:$0xff]
      %v270 = vld [vmem:[%s260 + $0x68] sm:$0xff]
      %v271 = vld [vmem:[%s260 + $0x78] sm:$0xff]
      %v272 = vld [vmem:[%s260 + $0x80] sm:$0xff]
      %v273 = vld [vmem:[%s260 + $0x90] sm:$0xff]
      %v274 = vld [vmem:[%s260 + $0x98] sm:$0xff]
      %v275 = vld [vmem:[%s260 + $0xa8] sm:$0xff]
      %v276 = vld [vmem:[%s260 + $0xb0] sm:$0xff]
      %v277 = vld [vmem:[%s260 + $0xc0] sm:$0xff]
      %v278 = vld [vmem:[%s260 + $0xc8] sm:$0xff]
      %v279 = vld [vmem:[%s260 + $0xd8] sm:$0xff]
      %v280 = vld [vmem:[%s260 + $0xe0] sm:$0xff]
      %v281 = vld [vmem:[%s260 + $0xf0] sm:$0xff]
      %v282 = vld [vmem:[%s260 + $0xf8] sm:$0xff]
      %v283 = vld [vmem:[%s260 + $0x108] sm:$0xff]
      %v284 = vld [vmem:[%s260 + $0x110] sm:$0xff]
      %v285 = vld [vmem:[%s260 + $0x120] sm:$0xff]
      %v286 = vld [vmem:[%s260 + $0x128] sm:$0xff]
      %v287 = vld [vmem:[%s260 + $0x138] sm:$0xff]
      %v288 = vld [vmem:[%s260 + $0x140] sm:$0xff]
      %v289 = vld [vmem:[%s260 + $0x150] sm:$0xff]
      %v290 = vld [vmem:[%s260 + $0x158] sm:$0xff]
      %v291 = vld [vmem:[%s260 + $0x168] sm:$0xff]
      %v292 = vld [vmem:[%s260 + $0x170] sm:$0xff]
      %v293 = vld [vmem:[%s260 + $0x1] sm:$0xff]
      %v294 = vld [vmem:[%s260 + $0x9] sm:$0xff]
      %v295 = vld [vmem:[%s260 + $0x19] sm:$0xff]
      %v296 = vld [vmem:[%s260 + $0x21] sm:$0xff]
      %v297 = vld [vmem:[%s260 + $0x31] sm:$0xff]
      %v298 = vld [vmem:[%s260 + $0x39] sm:$0xff]
      %v299 = vld [vmem:[%s260 + $0x49] sm:$0xff]
      %v300 = vld [vmem:[%s260 + $0x51] sm:$0xff]
      %v301 = vld [vmem:[%s260 + $0x61] sm:$0xff]
      %v302 = vld [vmem:[%s260 + $0x69] sm:$0xff]
      %v303 = vld [vmem:[%s260 + $0x79] sm:$0xff]
      %v304 = vld [vmem:[%s260 + $0x81] sm:$0xff]
      %v305 = vld [vmem:[%s260 + $0x91] sm:$0xff]
      %v306 = vld [vmem:[%s260 + $0x99] sm:$0xff]
      %v307 = vld [vmem:[%s260 + $0xa9] sm:$0xff]
      %v308 = vld [vmem:[%s260 + $0xb1] sm:$0xff]
      %v309 = vld [vmem:[%s260 + $0xc1] sm:$0xff]
      %v310 = vld [vmem:[%s260 + $0xc9] sm:$0xff]
      %v311 = vld [vmem:[%s260 + $0xd9] sm:$0xff]
      %v312 = vld [vmem:[%s260 + $0xe1] sm:$0xff]
      %v313 = vld [vmem:[%s260 + $0xf1] sm:$0xff]
      %v314 = vld [vmem:[%s260 + $0xf9] sm:$0xff]
      %v315 = vld [vmem:[%s260 + $0x109] sm:$0xff]
      %v316 = vld [vmem:[%s260 + $0x111] sm:$0xff]
      %v317 = vld [vmem:[%s260 + $0x121] sm:$0xff]
      %v318 = vld [vmem:[%s260 + $0x129] sm:$0xff]
      %v319 = vld [vmem:[%s260 + $0x139] sm:$0xff]
      %v320 = vld [vmem:[%s260 + $0x141] sm:$0xff]
      %v321 = vld [vmem:[%s260 + $0x151] sm:$0xff]
      %v322 = vld [vmem:[%s260 + $0x159] sm:$0xff]
      %v323 = vld [vmem:[%s260 + $0x169] sm:$0xff]
      %v324 = vld [vmem:[%s260 + $0x171] sm:$0xff]
      %v325 = vld [vmem:[%s260 + $0x2] sm:$0xff]
      %v326 = vld [vmem:[%s260 + $0xa] sm:$0xff]
      %v327 = vld [vmem:[%s260 + $0x1a] sm:$0xff]
      %v328 = vld [vmem:[%s260 + $0x22] sm:$0xff]
      %v329 = vld [vmem:[%s260 + $0x32] sm:$0xff]
      %v330 = vld [vmem:[%s260 + $0x3a] sm:$0xff]
      %v331 = vld [vmem:[%s260 + $0x4a] sm:$0xff]
      %v332 = vld [vmem:[%s260 + $0x52] sm:$0xff]
      %v333 = vld [vmem:[%s260 + $0x62] sm:$0xff]
      %v334 = vld [vmem:[%s260 + $0x6a] sm:$0xff]
      %v335 = vld [vmem:[%s260 + $0x7a] sm:$0xff]
      %v336 = vld [vmem:[%s260 + $0x82] sm:$0xff]
      %v337 = vld [vmem:[%s260 + $0x92] sm:$0xff]
      %v338 = vld [vmem:[%s260 + $0x9a] sm:$0xff]
      %v339 = vld [vmem:[%s260 + $0xaa] sm:$0xff]
      %v340 = vld [vmem:[%s260 + $0xb2] sm:$0xff]
      %v341 = vld [vmem:[%s260 + $0xc2] sm:$0xff]
      %v342 = vld [vmem:[%s260 + $0xca] sm:$0xff]
      %v343 = vld [vmem:[%s260 + $0xda] sm:$0xff]
      %v344 = vld [vmem:[%s260 + $0xe2] sm:$0xff]
      %v345 = vld [vmem:[%s260 + $0xf2] sm:$0xff]
      %v346 = vld [vmem:[%s260 + $0xfa] sm:$0xff]
      %v347 = vld [vmem:[%s260 + $0x10a] sm:$0xff]
      %v348 = vld [vmem:[%s260 + $0x112] sm:$0xff]
      %v349 = vld [vmem:[%s260 + $0x122] sm:$0xff]
      %v350 = vld [vmem:[%s260 + $0x12a] sm:$0xff]
      %v351 = vld [vmem:[%s260 + $0x13a] sm:$0xff]
      %v352 = vld [vmem:[%s260 + $0x142] sm:$0xff]
      %v353 = vld [vmem:[%s260 + $0x152] sm:$0xff]
      %v354 = vld [vmem:[%s260 + $0x15a] sm:$0xff]
      %v355 = vld [vmem:[%s260 + $0x16a] sm:$0xff]
      %v356 = vld [vmem:[%s260 + $0x172] sm:$0xff]
      %s357 = sadd.s32 %s258, 1
      %s358 = smul.u32 %s357, 24
      %s359 = scalar_lea.vmem %s233, %s358
      %v360 = vld [vmem:[%s359] sm:$0xff]
      %v361 = vld [vmem:[%s359 + $0x8] sm:$0xff]
      %v362 = vld [vmem:[%s359 + $0x18] sm:$0xff]
      %v363 = vld [vmem:[%s359 + $0x20] sm:$0xff]
      %v364 = vld [vmem:[%s359 + $0x30] sm:$0xff]
      %v365 = vld [vmem:[%s359 + $0x38] sm:$0xff]
      %v366 = vld [vmem:[%s359 + $0x48] sm:$0xff]
      %v367 = vld [vmem:[%s359 + $0x50] sm:$0xff]
      %v368 = vld [vmem:[%s359 + $0x60] sm:$0xff]
      %v369 = vld [vmem:[%s359 + $0x68] sm:$0xff]
      %v370 = vld [vmem:[%s359 + $0x78] sm:$0xff]
      %v371 = vld [vmem:[%s359 + $0x80] sm:$0xff]
      %v372 = vld [vmem:[%s359 + $0x90] sm:$0xff]
      %v373 = vld [vmem:[%s359 + $0x98] sm:$0xff]
      %v374 = vld [vmem:[%s359 + $0xa8] sm:$0xff]
      %v375 = vld [vmem:[%s359 + $0xb0] sm:$0xff]
      %v376 = vld [vmem:[%s359 + $0xc0] sm:$0xff]
      %v377 = vld [vmem:[%s359 + $0xc8] sm:$0xff]
      %v378 = vld [vmem:[%s359 + $0xd8] sm:$0xff]
      %v379 = vld [vmem:[%s359 + $0xe0] sm:$0xff]
      %v380 = vld [vmem:[%s359 + $0xf0] sm:$0xff]
      %v381 = vld [vmem:[%s359 + $0xf8] sm:$0xff]
      %v382 = vld [vmem:[%s359 + $0x108] sm:$0xff]
      %v383 = vld [vmem:[%s359 + $0x110] sm:$0xff]
      %v384 = vld [vmem:[%s359 + $0x120] sm:$0xff]
      %v385 = vld [vmem:[%s359 + $0x128] sm:$0xff]
      %v386 = vld [vmem:[%s359 + $0x138] sm:$0xff]
      %v387 = vld [vmem:[%s359 + $0x140] sm:$0xff]
      %v388 = vld [vmem:[%s359 + $0x150] sm:$0xff]
      %v389 = vld [vmem:[%s359 + $0x158] sm:$0xff]
      %v390 = vld [vmem:[%s359 + $0x168] sm:$0xff]
      %v391 = vld [vmem:[%s359 + $0x170] sm:$0xff]
      %v392 = vld [vmem:[%s359 + $0x1] sm:$0xff]
      %v393 = vld [vmem:[%s359 + $0x9] sm:$0xff]
      %v394 = vld [vmem:[%s359 + $0x19] sm:$0xff]
      %v395 = vld [vmem:[%s359 + $0x21] sm:$0xff]
      %v396 = vld [vmem:[%s359 + $0x31] sm:$0xff]
      %v397 = vld [vmem:[%s359 + $0x39] sm:$0xff]
      %v398 = vld [vmem:[%s359 + $0x49] sm:$0xff]
      %v399 = vld [vmem:[%s359 + $0x51] sm:$0xff]
      %v400 = vld [vmem:[%s359 + $0x61] sm:$0xff]
      %v401 = vld [vmem:[%s359 + $0x69] sm:$0xff]
      %v402 = vld [vmem:[%s359 + $0x79] sm:$0xff]
      %v403 = vld [vmem:[%s359 + $0x81] sm:$0xff]
      %v404 = vld [vmem:[%s359 + $0x91] sm:$0xff]
      %v405 = vld [vmem:[%s359 + $0x99] sm:$0xff]
      %v406 = vld [vmem:[%s359 + $0xa9] sm:$0xff]
      %v407 = vld [vmem:[%s359 + $0xb1] sm:$0xff]
      %v408 = vld [vmem:[%s359 + $0xc1] sm:$0xff]
      %v409 = vld [vmem:[%s359 + $0xc9] sm:$0xff]
      %v410 = vld [vmem:[%s359 + $0xd9] sm:$0xff]
      %v411 = vld [vmem:[%s359 + $0xe1] sm:$0xff]
      %v412 = vld [vmem:[%s359 + $0xf1] sm:$0xff]
      %v413 = vld [vmem:[%s359 + $0xf9] sm:$0xff]
      %v414 = vld [vmem:[%s359 + $0x109] sm:$0xff]
      %v415 = vld [vmem:[%s359 + $0x111] sm:$0xff]
      %v416 = vld [vmem:[%s359 + $0x121] sm:$0xff]
      %v417 = vld [vmem:[%s359 + $0x129] sm:$0xff]
      %v418 = vld [vmem:[%s359 + $0x139] sm:$0xff]
      %v419 = vld [vmem:[%s359 + $0x141] sm:$0xff]
      %v420 = vld [vmem:[%s359 + $0x151] sm:$0xff]
      %v421 = vld [vmem:[%s359 + $0x159] sm:$0xff]
      %v422 = vld [vmem:[%s359 + $0x169] sm:$0xff]
      %v423 = vld [vmem:[%s359 + $0x171] sm:$0xff]
      %v424 = vld [vmem:[%s359 + $0x2] sm:$0xff]
      %v425 = vld [vmem:[%s359 + $0xa] sm:$0xff]
      %v426 = vld [vmem:[%s359 + $0x1a] sm:$0xff]
      %v427 = vld [vmem:[%s359 + $0x22] sm:$0xff]
      %v428 = vld [vmem:[%s359 + $0x32] sm:$0xff]
      %v429 = vld [vmem:[%s359 + $0x3a] sm:$0xff]
      %v430 = vld [vmem:[%s359 + $0x4a] sm:$0xff]
      %v431 = vld [vmem:[%s359 + $0x52] sm:$0xff]
      %v432 = vld [vmem:[%s359 + $0x62] sm:$0xff]
      %v433 = vld [vmem:[%s359 + $0x6a] sm:$0xff]
      %v434 = vld [vmem:[%s359 + $0x7a] sm:$0xff]
      %v435 = vld [vmem:[%s359 + $0x82] sm:$0xff]
      %v436 = vld [vmem:[%s359 + $0x92] sm:$0xff]
      %v437 = vld [vmem:[%s359 + $0x9a] sm:$0xff]
      %v438 = vld [vmem:[%s359 + $0xaa] sm:$0xff]
      %v439 = vld [vmem:[%s359 + $0xb2] sm:$0xff]
      %v440 = vld [vmem:[%s359 + $0xc2] sm:$0xff]
      %v441 = vld [vmem:[%s359 + $0xca] sm:$0xff]
      %v442 = vld [vmem:[%s359 + $0xda] sm:$0xff]
      %v443 = vld [vmem:[%s359 + $0xe2] sm:$0xff]
      %v444 = vld [vmem:[%s359 + $0xf2] sm:$0xff]
      %v445 = vld [vmem:[%s359 + $0xfa] sm:$0xff]
      %v446 = vld [vmem:[%s359 + $0x10a] sm:$0xff]
      %v447 = vld [vmem:[%s359 + $0x112] sm:$0xff]
      %v448 = vld [vmem:[%s359 + $0x122] sm:$0xff]
      %v449 = vld [vmem:[%s359 + $0x12a] sm:$0xff]
      %v450 = vld [vmem:[%s359 + $0x13a] sm:$0xff]
      %v451 = vld [vmem:[%s359 + $0x142] sm:$0xff]
      %v452 = vld [vmem:[%s359 + $0x152] sm:$0xff]
      %v453 = vld [vmem:[%s359 + $0x15a] sm:$0xff]
      %v454 = vld [vmem:[%s359 + $0x16a] sm:$0xff]
      %v455 = vld [vmem:[%s359 + $0x172] sm:$0xff]
      %s456 = sadd.s32 %s258, 2
      %s457 = smul.u32 %s456, 24
      %s458 = scalar_lea.vmem %s233, %s457
      %v459 = vld [vmem:[%s458] sm:$0xff]
      %v460 = vld [vmem:[%s458 + $0x8] sm:$0xff]
      %v461 = vld [vmem:[%s458 + $0x18] sm:$0xff]
      %v462 = vld [vmem:[%s458 + $0x20] sm:$0xff]
      %v463 = vld [vmem:[%s458 + $0x30] sm:$0xff]
      %v464 = vld [vmem:[%s458 + $0x38] sm:$0xff]
      %v465 = vld [vmem:[%s458 + $0x48] sm:$0xff]
      %v466 = vld [vmem:[%s458 + $0x50] sm:$0xff]
      %v467 = vld [vmem:[%s458 + $0x60] sm:$0xff]
      %v468 = vld [vmem:[%s458 + $0x68] sm:$0xff]
      %v469 = vld [vmem:[%s458 + $0x78] sm:$0xff]
      %v470 = vld [vmem:[%s458 + $0x80] sm:$0xff]
      %v471 = vld [vmem:[%s458 + $0x90] sm:$0xff]
      %v472 = vld [vmem:[%s458 + $0x98] sm:$0xff]
      %v473 = vld [vmem:[%s458 + $0xa8] sm:$0xff]
      %v474 = vld [vmem:[%s458 + $0xb0] sm:$0xff]
      %v475 = vld [vmem:[%s458 + $0xc0] sm:$0xff]
      %v476 = vld [vmem:[%s458 + $0xc8] sm:$0xff]
      %v477 = vld [vmem:[%s458 + $0xd8] sm:$0xff]
      %v478 = vld [vmem:[%s458 + $0xe0] sm:$0xff]
      %v479 = vld [vmem:[%s458 + $0xf0] sm:$0xff]
      %v480 = vld [vmem:[%s458 + $0xf8] sm:$0xff]
      %v481 = vld [vmem:[%s458 + $0x108] sm:$0xff]
      %v482 = vld [vmem:[%s458 + $0x110] sm:$0xff]
      %v483 = vld [vmem:[%s458 + $0x120] sm:$0xff]
      %v484 = vld [vmem:[%s458 + $0x128] sm:$0xff]
      %v485 = vld [vmem:[%s458 + $0x138] sm:$0xff]
      %v486 = vld [vmem:[%s458 + $0x140] sm:$0xff]
      %v487 = vld [vmem:[%s458 + $0x150] sm:$0xff]
      %v488 = vld [vmem:[%s458 + $0x158] sm:$0xff]
      %v489 = vld [vmem:[%s458 + $0x168] sm:$0xff]
      %v490 = vld [vmem:[%s458 + $0x170] sm:$0xff]
      %v491 = vld [vmem:[%s458 + $0x1] sm:$0xff]
      %v492 = vld [vmem:[%s458 + $0x9] sm:$0xff]
      %v493 = vld [vmem:[%s458 + $0x19] sm:$0xff]
      %v494 = vld [vmem:[%s458 + $0x21] sm:$0xff]
      %v495 = vld [vmem:[%s458 + $0x31] sm:$0xff]
      %v496 = vld [vmem:[%s458 + $0x39] sm:$0xff]
      %v497 = vld [vmem:[%s458 + $0x49] sm:$0xff]
      %v498 = vld [vmem:[%s458 + $0x51] sm:$0xff]
      %v499 = vld [vmem:[%s458 + $0x61] sm:$0xff]
      %v500 = vld [vmem:[%s458 + $0x69] sm:$0xff]
      %v501 = vld [vmem:[%s458 + $0x79] sm:$0xff]
      %v502 = vld [vmem:[%s458 + $0x81] sm:$0xff]
      %v503 = vld [vmem:[%s458 + $0x91] sm:$0xff]
      %v504 = vld [vmem:[%s458 + $0x99] sm:$0xff]
      %v505 = vld [vmem:[%s458 + $0xa9] sm:$0xff]
      %v506 = vld [vmem:[%s458 + $0xb1] sm:$0xff]
      %v507 = vld [vmem:[%s458 + $0xc1] sm:$0xff]
      %v508 = vld [vmem:[%s458 + $0xc9] sm:$0xff]
      %v509 = vld [vmem:[%s458 + $0xd9] sm:$0xff]
      %v510 = vld [vmem:[%s458 + $0xe1] sm:$0xff]
      %v511 = vld [vmem:[%s458 + $0xf1] sm:$0xff]
      %v512 = vld [vmem:[%s458 + $0xf9] sm:$0xff]
      %v513 = vld [vmem:[%s458 + $0x109] sm:$0xff]
      %v514 = vld [vmem:[%s458 + $0x111] sm:$0xff]
      %v515 = vld [vmem:[%s458 + $0x121] sm:$0xff]
      %v516 = vld [vmem:[%s458 + $0x129] sm:$0xff]
      %v517 = vld [vmem:[%s458 + $0x139] sm:$0xff]
      %v518 = vld [vmem:[%s458 + $0x141] sm:$0xff]
      %v519 = vld [vmem:[%s458 + $0x151] sm:$0xff]
      %v520 = vld [vmem:[%s458 + $0x159] sm:$0xff]
      %v521 = vld [vmem:[%s458 + $0x169] sm:$0xff]
      %v522 = vld [vmem:[%s458 + $0x171] sm:$0xff]
      %v523 = vld [vmem:[%s458 + $0x2] sm:$0xff]
      %v524 = vld [vmem:[%s458 + $0xa] sm:$0xff]
      %v525 = vld [vmem:[%s458 + $0x1a] sm:$0xff]
      %v526 = vld [vmem:[%s458 + $0x22] sm:$0xff]
      %v527 = vld [vmem:[%s458 + $0x32] sm:$0xff]
      %v528 = vld [vmem:[%s458 + $0x3a] sm:$0xff]
      %v529 = vld [vmem:[%s458 + $0x4a] sm:$0xff]
      %v530 = vld [vmem:[%s458 + $0x52] sm:$0xff]
      %v531 = vld [vmem:[%s458 + $0x62] sm:$0xff]
      %v532 = vld [vmem:[%s458 + $0x6a] sm:$0xff]
      %v533 = vld [vmem:[%s458 + $0x7a] sm:$0xff]
      %v534 = vld [vmem:[%s458 + $0x82] sm:$0xff]
      %v535 = vld [vmem:[%s458 + $0x92] sm:$0xff]
      %v536 = vld [vmem:[%s458 + $0x9a] sm:$0xff]
      %v537 = vld [vmem:[%s458 + $0xaa] sm:$0xff]
      %v538 = vld [vmem:[%s458 + $0xb2] sm:$0xff]
      %v539 = vld [vmem:[%s458 + $0xc2] sm:$0xff]
      %v540 = vld [vmem:[%s458 + $0xca] sm:$0xff]
      %v541 = vld [vmem:[%s458 + $0xda] sm:$0xff]
      %v542 = vld [vmem:[%s458 + $0xe2] sm:$0xff]
      %v543 = vld [vmem:[%s458 + $0xf2] sm:$0xff]
      %v544 = vld [vmem:[%s458 + $0xfa] sm:$0xff]
      %v545 = vld [vmem:[%s458 + $0x10a] sm:$0xff]
      %v546 = vld [vmem:[%s458 + $0x112] sm:$0xff]
      %v547 = vld [vmem:[%s458 + $0x122] sm:$0xff]
      %v548 = vld [vmem:[%s458 + $0x12a] sm:$0xff]
      %v549 = vld [vmem:[%s458 + $0x13a] sm:$0xff]
      %v550 = vld [vmem:[%s458 + $0x142] sm:$0xff]
      %v551 = vld [vmem:[%s458 + $0x152] sm:$0xff]
      %v552 = vld [vmem:[%s458 + $0x15a] sm:$0xff]
      %v553 = vld [vmem:[%s458 + $0x16a] sm:$0xff]
      %v554 = vld [vmem:[%s458 + $0x172] sm:$0xff]
      %587 = vrot.lane.b32.xlu0 %v293, 4
      %v588 = vpop.permute.xlu0 %587
      %589 = vrot.lane.b32.xlu0 %v294, 4
      %v590 = vpop.permute.xlu0 %589
      %591 = vrot.lane.b32.xlu0 %v295, 4
      %v592 = vpop.permute.xlu0 %591
      %593 = vrot.lane.b32.xlu0 %v296, 4
      %v594 = vpop.permute.xlu0 %593
      %595 = vrot.lane.b32.xlu0 %v297, 4
      %v596 = vpop.permute.xlu0 %595
      %597 = vrot.lane.b32.xlu0 %v298, 4
      %v598 = vpop.permute.xlu0 %597
      %599 = vrot.lane.b32.xlu0 %v299, 4
      %v600 = vpop.permute.xlu0 %599
      %601 = vrot.lane.b32.xlu0 %v300, 4
      %v602 = vpop.permute.xlu0 %601
      %603 = vrot.lane.b32.xlu0 %v301, 4
      %v604 = vpop.permute.xlu0 %603
      %605 = vrot.lane.b32.xlu0 %v302, 4
      %v606 = vpop.permute.xlu0 %605
      %607 = vrot.lane.b32.xlu0 %v303, 4
      %v608 = vpop.permute.xlu0 %607
      %609 = vrot.lane.b32.xlu0 %v304, 4
      %v610 = vpop.permute.xlu0 %609
      %611 = vrot.lane.b32.xlu0 %v305, 4
      %v612 = vpop.permute.xlu0 %611
      %613 = vrot.lane.b32.xlu0 %v306, 4
      %v614 = vpop.permute.xlu0 %613
      %615 = vrot.lane.b32.xlu0 %v307, 4
      %v616 = vpop.permute.xlu0 %615
      %617 = vrot.lane.b32.xlu0 %v308, 4
      %v618 = vpop.permute.xlu0 %617
      %619 = vrot.lane.b32.xlu0 %v309, 4
      %v620 = vpop.permute.xlu0 %619
      %621 = vrot.lane.b32.xlu0 %v310, 4
      %v622 = vpop.permute.xlu0 %621
      %623 = vrot.lane.b32.xlu0 %v311, 4
      %v624 = vpop.permute.xlu0 %623
      %625 = vrot.lane.b32.xlu0 %v312, 4
      %v626 = vpop.permute.xlu0 %625
      %627 = vrot.lane.b32.xlu0 %v313, 4
      %v628 = vpop.permute.xlu0 %627
      %629 = vrot.lane.b32.xlu0 %v314, 4
      %v630 = vpop.permute.xlu0 %629
      %631 = vrot.lane.b32.xlu0 %v315, 4
      %v632 = vpop.permute.xlu0 %631
      %633 = vrot.lane.b32.xlu0 %v316, 4
      %v634 = vpop.permute.xlu0 %633
      %635 = vrot.lane.b32.xlu0 %v317, 4
      %v636 = vpop.permute.xlu0 %635
      %637 = vrot.lane.b32.xlu0 %v318, 4
      %v638 = vpop.permute.xlu0 %637
      %639 = vrot.lane.b32.xlu0 %v319, 4
      %v640 = vpop.permute.xlu0 %639
      %641 = vrot.lane.b32.xlu0 %v320, 4
      %v642 = vpop.permute.xlu0 %641
      %643 = vrot.lane.b32.xlu0 %v321, 4
      %v644 = vpop.permute.xlu0 %643
      %645 = vrot.lane.b32.xlu0 %v322, 4
      %v646 = vpop.permute.xlu0 %645
      %647 = vrot.lane.b32.xlu0 %v323, 4
      %v648 = vpop.permute.xlu0 %647
      %649 = vrot.lane.b32.xlu0 %v324, 4
      %v650 = vpop.permute.xlu0 %649
      %715 = vrot.lane.b32.xlu0 %v325, 8
      %v716 = vpop.permute.xlu0 %715
      %717 = vrot.lane.b32.xlu0 %v326, 8
      %v718 = vpop.permute.xlu0 %717
      %719 = vrot.lane.b32.xlu0 %v327, 8
      %v720 = vpop.permute.xlu0 %719
      %721 = vrot.lane.b32.xlu0 %v328, 8
      %v722 = vpop.permute.xlu0 %721
      %723 = vrot.lane.b32.xlu0 %v329, 8
      %v724 = vpop.permute.xlu0 %723
      %725 = vrot.lane.b32.xlu0 %v330, 8
      %v726 = vpop.permute.xlu0 %725
      %727 = vrot.lane.b32.xlu0 %v331, 8
      %v728 = vpop.permute.xlu0 %727
      %729 = vrot.lane.b32.xlu0 %v332, 8
      %v730 = vpop.permute.xlu0 %729
      %731 = vrot.lane.b32.xlu0 %v333, 8
      %v732 = vpop.permute.xlu0 %731
      %733 = vrot.lane.b32.xlu0 %v334, 8
      %v734 = vpop.permute.xlu0 %733
      %735 = vrot.lane.b32.xlu0 %v335, 8
      %v736 = vpop.permute.xlu0 %735
      %737 = vrot.lane.b32.xlu0 %v336, 8
      %v738 = vpop.permute.xlu0 %737
      %739 = vrot.lane.b32.xlu0 %v337, 8
      %v740 = vpop.permute.xlu0 %739
      %741 = vrot.lane.b32.xlu0 %v338, 8
      %v742 = vpop.permute.xlu0 %741
      %743 = vrot.lane.b32.xlu0 %v339, 8
      %v744 = vpop.permute.xlu0 %743
      %745 = vrot.lane.b32.xlu0 %v340, 8
      %v746 = vpop.permute.xlu0 %745
      %747 = vrot.lane.b32.xlu0 %v341, 8
      %v748 = vpop.permute.xlu0 %747
      %749 = vrot.lane.b32.xlu0 %v342, 8
      %v750 = vpop.permute.xlu0 %749
      %751 = vrot.lane.b32.xlu0 %v343, 8
      %v752 = vpop.permute.xlu0 %751
      %753 = vrot.lane.b32.xlu0 %v344, 8
      %v754 = vpop.permute.xlu0 %753
      %755 = vrot.lane.b32.xlu0 %v345, 8
      %v756 = vpop.permute.xlu0 %755
      %757 = vrot.lane.b32.xlu0 %v346, 8
      %v758 = vpop.permute.xlu0 %757
      %759 = vrot.lane.b32.xlu0 %v347, 8
      %v760 = vpop.permute.xlu0 %759
      %761 = vrot.lane.b32.xlu0 %v348, 8
      %v762 = vpop.permute.xlu0 %761
      %763 = vrot.lane.b32.xlu0 %v349, 8
      %v764 = vpop.permute.xlu0 %763
      %765 = vrot.lane.b32.xlu0 %v350, 8
      %v766 = vpop.permute.xlu0 %765
      %767 = vrot.lane.b32.xlu0 %v351, 8
      %v768 = vpop.permute.xlu0 %767
      %769 = vrot.lane.b32.xlu0 %v352, 8
      %v770 = vpop.permute.xlu0 %769
      %771 = vrot.lane.b32.xlu0 %v353, 8
      %v772 = vpop.permute.xlu0 %771
      %773 = vrot.lane.b32.xlu0 %v354, 8
      %v774 = vpop.permute.xlu0 %773
      %775 = vrot.lane.b32.xlu0 %v355, 8
      %v776 = vpop.permute.xlu0 %775
      %777 = vrot.lane.b32.xlu0 %v356, 8
      %v778 = vpop.permute.xlu0 %777
      %843 = vrot.lane.b32.xlu0 %v360, 12
      %v844 = vpop.permute.xlu0 %843
      %845 = vrot.lane.b32.xlu0 %v361, 12
      %v846 = vpop.permute.xlu0 %845
      %847 = vrot.lane.b32.xlu0 %v362, 12
      %v848 = vpop.permute.xlu0 %847
      %849 = vrot.lane.b32.xlu0 %v363, 12
      %v850 = vpop.permute.xlu0 %849
      %851 = vrot.lane.b32.xlu0 %v364, 12
      %v852 = vpop.permute.xlu0 %851
      %853 = vrot.lane.b32.xlu0 %v365, 12
      %v854 = vpop.permute.xlu0 %853
      %855 = vrot.lane.b32.xlu0 %v366, 12
      %v856 = vpop.permute.xlu0 %855
      %857 = vrot.lane.b32.xlu0 %v367, 12
      %v858 = vpop.permute.xlu0 %857
      %859 = vrot.lane.b32.xlu0 %v368, 12
      %v860 = vpop.permute.xlu0 %859
      %861 = vrot.lane.b32.xlu0 %v369, 12
      %v862 = vpop.permute.xlu0 %861
      %863 = vrot.lane.b32.xlu0 %v370, 12
      %v864 = vpop.permute.xlu0 %863
      %865 = vrot.lane.b32.xlu0 %v371, 12
      %v866 = vpop.permute.xlu0 %865
      %867 = vrot.lane.b32.xlu0 %v372, 12
      %v868 = vpop.permute.xlu0 %867
      %869 = vrot.lane.b32.xlu0 %v373, 12
      %v870 = vpop.permute.xlu0 %869
      %871 = vrot.lane.b32.xlu0 %v374, 12
      %v872 = vpop.permute.xlu0 %871
      %873 = vrot.lane.b32.xlu0 %v375, 12
      %v874 = vpop.permute.xlu0 %873
      %875 = vrot.lane.b32.xlu0 %v376, 12
      %v876 = vpop.permute.xlu0 %875
      %877 = vrot.lane.b32.xlu0 %v377, 12
      %v878 = vpop.permute.xlu0 %877
      %879 = vrot.lane.b32.xlu0 %v378, 12
      %v880 = vpop.permute.xlu0 %879
      %881 = vrot.lane.b32.xlu0 %v379, 12
      %v882 = vpop.permute.xlu0 %881
      %883 = vrot.lane.b32.xlu0 %v380, 12
      %v884 = vpop.permute.xlu0 %883
      %885 = vrot.lane.b32.xlu0 %v381, 12
      %v886 = vpop.permute.xlu0 %885
      %887 = vrot.lane.b32.xlu0 %v382, 12
      %v888 = vpop.permute.xlu0 %887
      %889 = vrot.lane.b32.xlu0 %v383, 12
      %v890 = vpop.permute.xlu0 %889
      %891 = vrot.lane.b32.xlu0 %v384, 12
      %v892 = vpop.permute.xlu0 %891
      %893 = vrot.lane.b32.xlu0 %v385, 12
      %v894 = vpop.permute.xlu0 %893
      %895 = vrot.lane.b32.xlu0 %v386, 12
      %v896 = vpop.permute.xlu0 %895
      %897 = vrot.lane.b32.xlu0 %v387, 12
      %v898 = vpop.permute.xlu0 %897
      %899 = vrot.lane.b32.xlu0 %v388, 12
      %v900 = vpop.permute.xlu0 %899
      %901 = vrot.lane.b32.xlu0 %v389, 12
      %v902 = vpop.permute.xlu0 %901
      %903 = vrot.lane.b32.xlu0 %v390, 12
      %v904 = vpop.permute.xlu0 %903
      %905 = vrot.lane.b32.xlu0 %v391, 12
      %v906 = vpop.permute.xlu0 %905
      %971 = vrot.lane.b32.xlu0 %v392, 16
      %v972 = vpop.permute.xlu0 %971
      %973 = vrot.lane.b32.xlu0 %v393, 16
      %v974 = vpop.permute.xlu0 %973
      %975 = vrot.lane.b32.xlu0 %v394, 16
      %v976 = vpop.permute.xlu0 %975
      %977 = vrot.lane.b32.xlu0 %v395, 16
      %v978 = vpop.permute.xlu0 %977
      %979 = vrot.lane.b32.xlu0 %v396, 16
      %v980 = vpop.permute.xlu0 %979
      %981 = vrot.lane.b32.xlu0 %v397, 16
      %v982 = vpop.permute.xlu0 %981
      %983 = vrot.lane.b32.xlu0 %v398, 16
      %v984 = vpop.permute.xlu0 %983
      %985 = vrot.lane.b32.xlu0 %v399, 16
      %v986 = vpop.permute.xlu0 %985
      %987 = vrot.lane.b32.xlu0 %v400, 16
      %v988 = vpop.permute.xlu0 %987
      %989 = vrot.lane.b32.xlu0 %v401, 16
      %v990 = vpop.permute.xlu0 %989
      %991 = vrot.lane.b32.xlu0 %v402, 16
      %v992 = vpop.permute.xlu0 %991
      %993 = vrot.lane.b32.xlu0 %v403, 16
      %v994 = vpop.permute.xlu0 %993
      %995 = vrot.lane.b32.xlu0 %v404, 16
      %v996 = vpop.permute.xlu0 %995
      %997 = vrot.lane.b32.xlu0 %v405, 16
      %v998 = vpop.permute.xlu0 %997
      %999 = vrot.lane.b32.xlu0 %v406, 16
      %v1000 = vpop.permute.xlu0 %999
      %1001 = vrot.lane.b32.xlu0 %v407, 16
      %v1002 = vpop.permute.xlu0 %1001
      %1003 = vrot.lane.b32.xlu0 %v408, 16
      %v1004 = vpop.permute.xlu0 %1003
      %1005 = vrot.lane.b32.xlu0 %v409, 16
      %v1006 = vpop.permute.xlu0 %1005
      %1007 = vrot.lane.b32.xlu0 %v410, 16
      %v1008 = vpop.permute.xlu0 %1007
      %1009 = vrot.lane.b32.xlu0 %v411, 16
      %v1010 = vpop.permute.xlu0 %1009
      %1011 = vrot.lane.b32.xlu0 %v412, 16
      %v1012 = vpop.permute.xlu0 %1011
      %1013 = vrot.lane.b32.xlu0 %v413, 16
      %v1014 = vpop.permute.xlu0 %1013
      %1015 = vrot.lane.b32.xlu0 %v414, 16
      %v1016 = vpop.permute.xlu0 %1015
      %1017 = vrot.lane.b32.xlu0 %v415, 16
      %v1018 = vpop.permute.xlu0 %1017
      %1019 = vrot.lane.b32.xlu0 %v416, 16
      %v1020 = vpop.permute.xlu0 %1019
      %1021 = vrot.lane.b32.xlu0 %v417, 16
      %v1022 = vpop.permute.xlu0 %1021
      %1023 = vrot.lane.b32.xlu0 %v418, 16
      %v1024 = vpop.permute.xlu0 %1023
      %1025 = vrot.lane.b32.xlu0 %v419, 16
      %v1026 = vpop.permute.xlu0 %1025
      %1027 = vrot.lane.b32.xlu0 %v420, 16
      %v1028 = vpop.permute.xlu0 %1027
      %1029 = vrot.lane.b32.xlu0 %v421, 16
      %v1030 = vpop.permute.xlu0 %1029
      %1031 = vrot.lane.b32.xlu0 %v422, 16
      %v1032 = vpop.permute.xlu0 %1031
      %1033 = vrot.lane.b32.xlu0 %v423, 16
      %v1034 = vpop.permute.xlu0 %1033
      %1099 = vrot.lane.b32.xlu0 %v424, 20
      %v1100 = vpop.permute.xlu0 %1099
      %1101 = vrot.lane.b32.xlu0 %v425, 20
      %v1102 = vpop.permute.xlu0 %1101
      %1103 = vrot.lane.b32.xlu0 %v426, 20
      %v1104 = vpop.permute.xlu0 %1103
      %1105 = vrot.lane.b32.xlu0 %v427, 20
      %v1106 = vpop.permute.xlu0 %1105
      %1107 = vrot.lane.b32.xlu0 %v428, 20
      %v1108 = vpop.permute.xlu0 %1107
      %1109 = vrot.lane.b32.xlu0 %v429, 20
      %v1110 = vpop.permute.xlu0 %1109
      %1111 = vrot.lane.b32.xlu0 %v430, 20
      %v1112 = vpop.permute.xlu0 %1111
      %1113 = vrot.lane.b32.xlu0 %v431, 20
      %v1114 = vpop.permute.xlu0 %1113
      %1115 = vrot.lane.b32.xlu0 %v432, 20
      %v1116 = vpop.permute.xlu0 %1115
      %1117 = vrot.lane.b32.xlu0 %v433, 20
      %v1118 = vpop.permute.xlu0 %1117
      %1119 = vrot.lane.b32.xlu0 %v434, 20
      %v1120 = vpop.permute.xlu0 %1119
      %1121 = vrot.lane.b32.xlu0 %v435, 20
      %v1122 = vpop.permute.xlu0 %1121
      %1123 = vrot.lane.b32.xlu0 %v436, 20
      %v1124 = vpop.permute.xlu0 %1123
      %1125 = vrot.lane.b32.xlu0 %v437, 20
      %v1126 = vpop.permute.xlu0 %1125
      %1127 = vrot.lane.b32.xlu0 %v438, 20
      %v1128 = vpop.permute.xlu0 %1127
      %1129 = vrot.lane.b32.xlu0 %v439, 20
      %v1130 = vpop.permute.xlu0 %1129
      %1131 = vrot.lane.b32.xlu0 %v440, 20
      %v1132 = vpop.permute.xlu0 %1131
      %1133 = vrot.lane.b32.xlu0 %v441, 20
      %v1134 = vpop.permute.xlu0 %1133
      %1135 = vrot.lane.b32.xlu0 %v442, 20
      %v1136 = vpop.permute.xlu0 %1135
      %1137 = vrot.lane.b32.xlu0 %v443, 20
      %v1138 = vpop.permute.xlu0 %1137
      %1139 = vrot.lane.b32.xlu0 %v444, 20
      %v1140 = vpop.permute.xlu0 %1139
      %1141 = vrot.lane.b32.xlu0 %v445, 20
      %v1142 = vpop.permute.xlu0 %1141
      %1143 = vrot.lane.b32.xlu0 %v446, 20
      %v1144 = vpop.permute.xlu0 %1143
      %1145 = vrot.lane.b32.xlu0 %v447, 20
      %v1146 = vpop.permute.xlu0 %1145
      %1147 = vrot.lane.b32.xlu0 %v448, 20
      %v1148 = vpop.permute.xlu0 %1147
      %1149 = vrot.lane.b32.xlu0 %v449, 20
      %v1150 = vpop.permute.xlu0 %1149
      %1151 = vrot.lane.b32.xlu0 %v450, 20
      %v1152 = vpop.permute.xlu0 %1151
      %1153 = vrot.lane.b32.xlu0 %v451, 20
      %v1154 = vpop.permute.xlu0 %1153
      %1155 = vrot.lane.b32.xlu0 %v452, 20
      %v1156 = vpop.permute.xlu0 %1155
      %1157 = vrot.lane.b32.xlu0 %v453, 20
      %v1158 = vpop.permute.xlu0 %1157
      %1159 = vrot.lane.b32.xlu0 %v454, 20
      %v1160 = vpop.permute.xlu0 %1159
      %1161 = vrot.lane.b32.xlu0 %v455, 20
      %v1162 = vpop.permute.xlu0 %1161
      %1227 = vrot.lane.b32.xlu0 %v459, 24
      %v1228 = vpop.permute.xlu0 %1227
      %1229 = vrot.lane.b32.xlu0 %v460, 24
      %v1230 = vpop.permute.xlu0 %1229
      %1231 = vrot.lane.b32.xlu0 %v461, 24
      %v1232 = vpop.permute.xlu0 %1231
      %1233 = vrot.lane.b32.xlu0 %v462, 24
      %v1234 = vpop.permute.xlu0 %1233
      %1235 = vrot.lane.b32.xlu0 %v463, 24
      %v1236 = vpop.permute.xlu0 %1235
      %1237 = vrot.lane.b32.xlu0 %v464, 24
      %v1238 = vpop.permute.xlu0 %1237
      %1239 = vrot.lane.b32.xlu0 %v465, 24
      %v1240 = vpop.permute.xlu0 %1239
      %1241 = vrot.lane.b32.xlu0 %v466, 24
      %v1242 = vpop.permute.xlu0 %1241
      %1243 = vrot.lane.b32.xlu0 %v467, 24
      %v1244 = vpop.permute.xlu0 %1243
      %1245 = vrot.lane.b32.xlu0 %v468, 24
      %v1246 = vpop.permute.xlu0 %1245
      %1247 = vrot.lane.b32.xlu0 %v469, 24
      %v1248 = vpop.permute.xlu0 %1247
      %1249 = vrot.lane.b32.xlu0 %v470, 24
      %v1250 = vpop.permute.xlu0 %1249
      %1251 = vrot.lane.b32.xlu0 %v471, 24
      %v1252 = vpop.permute.xlu0 %1251
      %1253 = vrot.lane.b32.xlu0 %v472, 24
      %v1254 = vpop.permute.xlu0 %1253
      %1255 = vrot.lane.b32.xlu0 %v473, 24
      %v1256 = vpop.permute.xlu0 %1255
      %1257 = vrot.lane.b32.xlu0 %v474, 24
      %v1258 = vpop.permute.xlu0 %1257
      %1259 = vrot.lane.b32.xlu0 %v475, 24
      %v1260 = vpop.permute.xlu0 %1259
      %1261 = vrot.lane.b32.xlu0 %v476, 24
      %v1262 = vpop.permute.xlu0 %1261
      %1263 = vrot.lane.b32.xlu0 %v477, 24
      %v1264 = vpop.permute.xlu0 %1263
      %1265 = vrot.lane.b32.xlu0 %v478, 24
      %v1266 = vpop.permute.xlu0 %1265
      %1267 = vrot.lane.b32.xlu0 %v479, 24
      %v1268 = vpop.permute.xlu0 %1267
      %1269 = vrot.lane.b32.xlu0 %v480, 24
      %v1270 = vpop.permute.xlu0 %1269
      %1271 = vrot.lane.b32.xlu0 %v481, 24
      %v1272 = vpop.permute.xlu0 %1271
      %1273 = vrot.lane.b32.xlu0 %v482, 24
      %v1274 = vpop.permute.xlu0 %1273
      %1275 = vrot.lane.b32.xlu0 %v483, 24
      %v1276 = vpop.permute.xlu0 %1275
      %1277 = vrot.lane.b32.xlu0 %v484, 24
      %v1278 = vpop.permute.xlu0 %1277
      %1279 = vrot.lane.b32.xlu0 %v485, 24
      %v1280 = vpop.permute.xlu0 %1279
      %1281 = vrot.lane.b32.xlu0 %v486, 24
      %v1282 = vpop.permute.xlu0 %1281
      %1283 = vrot.lane.b32.xlu0 %v487, 24
      %v1284 = vpop.permute.xlu0 %1283
      %1285 = vrot.lane.b32.xlu0 %v488, 24
      %v1286 = vpop.permute.xlu0 %1285
      %1287 = vrot.lane.b32.xlu0 %v489, 24
      %v1288 = vpop.permute.xlu0 %1287
      %1289 = vrot.lane.b32.xlu0 %v490, 24
      %v1290 = vpop.permute.xlu0 %1289
      %1355 = vrot.lane.b32.xlu0 %v491, 28
      %v1356 = vpop.permute.xlu0 %1355
      %1357 = vrot.lane.b32.xlu0 %v492, 28
      %v1358 = vpop.permute.xlu0 %1357
      %1359 = vrot.lane.b32.xlu0 %v493, 28
      %v1360 = vpop.permute.xlu0 %1359
      %1361 = vrot.lane.b32.xlu0 %v494, 28
      %v1362 = vpop.permute.xlu0 %1361
      %1363 = vrot.lane.b32.xlu0 %v495, 28
      %v1364 = vpop.permute.xlu0 %1363
      %1365 = vrot.lane.b32.xlu0 %v496, 28
      %v1366 = vpop.permute.xlu0 %1365
      %1367 = vrot.lane.b32.xlu0 %v497, 28
      %v1368 = vpop.permute.xlu0 %1367
      %1369 = vrot.lane.b32.xlu0 %v498, 28
      %v1370 = vpop.permute.xlu0 %1369
      %1371 = vrot.lane.b32.xlu0 %v499, 28
      %v1372 = vpop.permute.xlu0 %1371
      %1373 = vrot.lane.b32.xlu0 %v500, 28
      %v1374 = vpop.permute.xlu0 %1373
      %1375 = vrot.lane.b32.xlu0 %v501, 28
      %v1376 = vpop.permute.xlu0 %1375
      %1377 = vrot.lane.b32.xlu0 %v502, 28
      %v1378 = vpop.permute.xlu0 %1377
      %1379 = vrot.lane.b32.xlu0 %v503, 28
      %v1380 = vpop.permute.xlu0 %1379
      %1381 = vrot.lane.b32.xlu0 %v504, 28
      %v1382 = vpop.permute.xlu0 %1381
      %1383 = vrot.lane.b32.xlu0 %v505, 28
      %v1384 = vpop.permute.xlu0 %1383
      %1385 = vrot.lane.b32.xlu0 %v506, 28
      %v1386 = vpop.permute.xlu0 %1385
      %1387 = vrot.lane.b32.xlu0 %v507, 28
      %v1388 = vpop.permute.xlu0 %1387
      %1389 = vrot.lane.b32.xlu0 %v508, 28
      %v1390 = vpop.permute.xlu0 %1389
      %1391 = vrot.lane.b32.xlu0 %v509, 28
      %v1392 = vpop.permute.xlu0 %1391
      %1393 = vrot.lane.b32.xlu0 %v510, 28
      %v1394 = vpop.permute.xlu0 %1393
      %1395 = vrot.lane.b32.xlu0 %v511, 28
      %v1396 = vpop.permute.xlu0 %1395
      %1397 = vrot.lane.b32.xlu0 %v512, 28
      %v1398 = vpop.permute.xlu0 %1397
      %1399 = vrot.lane.b32.xlu0 %v513, 28
      %v1400 = vpop.permute.xlu0 %1399
      %1401 = vrot.lane.b32.xlu0 %v514, 28
      %v1402 = vpop.permute.xlu0 %1401
      %1403 = vrot.lane.b32.xlu0 %v515, 28
      %v1404 = vpop.permute.xlu0 %1403
      %1405 = vrot.lane.b32.xlu0 %v516, 28
      %v1406 = vpop.permute.xlu0 %1405
      %1407 = vrot.lane.b32.xlu0 %v517, 28
      %v1408 = vpop.permute.xlu0 %1407
      %1409 = vrot.lane.b32.xlu0 %v518, 28
      %v1410 = vpop.permute.xlu0 %1409
      %1411 = vrot.lane.b32.xlu0 %v519, 28
      %v1412 = vpop.permute.xlu0 %1411
      %1413 = vrot.lane.b32.xlu0 %v520, 28
      %v1414 = vpop.permute.xlu0 %1413
      %1415 = vrot.lane.b32.xlu0 %v521, 28
      %v1416 = vpop.permute.xlu0 %1415
      %1417 = vrot.lane.b32.xlu0 %v522, 28
      %v1418 = vpop.permute.xlu0 %1417
      %1483 = vrot.lane.b32.xlu0 %v523, 32
      %v1484 = vpop.permute.xlu0 %1483
      %1485 = vrot.lane.b32.xlu0 %v524, 32
      %v1486 = vpop.permute.xlu0 %1485
      %1487 = vrot.lane.b32.xlu0 %v525, 32
      %v1488 = vpop.permute.xlu0 %1487
      %1489 = vrot.lane.b32.xlu0 %v526, 32
      %v1490 = vpop.permute.xlu0 %1489
      %1491 = vrot.lane.b32.xlu0 %v527, 32
      %v1492 = vpop.permute.xlu0 %1491
      %1493 = vrot.lane.b32.xlu0 %v528, 32
      %v1494 = vpop.permute.xlu0 %1493
      %1495 = vrot.lane.b32.xlu0 %v529, 32
      %v1496 = vpop.permute.xlu0 %1495
      %1497 = vrot.lane.b32.xlu0 %v530, 32
      %v1498 = vpop.permute.xlu0 %1497
      %1499 = vrot.lane.b32.xlu0 %v531, 32
      %v1500 = vpop.permute.xlu0 %1499
      %1501 = vrot.lane.b32.xlu0 %v532, 32
      %v1502 = vpop.permute.xlu0 %1501
      %1503 = vrot.lane.b32.xlu0 %v533, 32
      %v1504 = vpop.permute.xlu0 %1503
      %1505 = vrot.lane.b32.xlu0 %v534, 32
      %v1506 = vpop.permute.xlu0 %1505
      %1507 = vrot.lane.b32.xlu0 %v535, 32
      %v1508 = vpop.permute.xlu0 %1507
      %1509 = vrot.lane.b32.xlu0 %v536, 32
      %v1510 = vpop.permute.xlu0 %1509
      %1511 = vrot.lane.b32.xlu0 %v537, 32
      %v1512 = vpop.permute.xlu0 %1511
      %1513 = vrot.lane.b32.xlu0 %v538, 32
      %v1514 = vpop.permute.xlu0 %1513
      %1515 = vrot.lane.b32.xlu0 %v539, 32
      %v1516 = vpop.permute.xlu0 %1515
      %1517 = vrot.lane.b32.xlu0 %v540, 32
      %v1518 = vpop.permute.xlu0 %1517
      %1519 = vrot.lane.b32.xlu0 %v541, 32
      %v1520 = vpop.permute.xlu0 %1519
      %1521 = vrot.lane.b32.xlu0 %v542, 32
      %v1522 = vpop.permute.xlu0 %1521
      %1523 = vrot.lane.b32.xlu0 %v543, 32
      %v1524 = vpop.permute.xlu0 %1523
      %1525 = vrot.lane.b32.xlu0 %v544, 32
      %v1526 = vpop.permute.xlu0 %1525
      %1527 = vrot.lane.b32.xlu0 %v545, 32
      %v1528 = vpop.permute.xlu0 %1527
      %1529 = vrot.lane.b32.xlu0 %v546, 32
      %v1530 = vpop.permute.xlu0 %1529
      %1531 = vrot.lane.b32.xlu0 %v547, 32
      %v1532 = vpop.permute.xlu0 %1531
      %1533 = vrot.lane.b32.xlu0 %v548, 32
      %v1534 = vpop.permute.xlu0 %1533
      %1535 = vrot.lane.b32.xlu0 %v549, 32
      %v1536 = vpop.permute.xlu0 %1535
      %1537 = vrot.lane.b32.xlu0 %v550, 32
      %v1538 = vpop.permute.xlu0 %1537
      %1539 = vrot.lane.b32.xlu0 %v551, 32
      %v1540 = vpop.permute.xlu0 %1539
      %1541 = vrot.lane.b32.xlu0 %v552, 32
      %v1542 = vpop.permute.xlu0 %1541
      %1543 = vrot.lane.b32.xlu0 %v553, 32
      %v1544 = vpop.permute.xlu0 %1543
      %1545 = vrot.lane.b32.xlu0 %v554, 32
      %v1546 = vpop.permute.xlu0 %1545
      %vm1579 = vcmask 31744
      %v1580 = vsel %vm1579, %v261, %v588
      %v1581 = vsel %vm1579, %v262, %v590
      %v1582 = vsel %vm1579, %v263, %v592
      %v1583 = vsel %vm1579, %v264, %v594
      %v1584 = vsel %vm1579, %v265, %v596
      %v1585 = vsel %vm1579, %v266, %v598
      %v1586 = vsel %vm1579, %v267, %v600
      %v1587 = vsel %vm1579, %v268, %v602
      %v1588 = vsel %vm1579, %v269, %v604
      %v1589 = vsel %vm1579, %v270, %v606
      %v1590 = vsel %vm1579, %v271, %v608
      %v1591 = vsel %vm1579, %v272, %v610
      %v1592 = vsel %vm1579, %v273, %v612
      %v1593 = vsel %vm1579, %v274, %v614
      %v1594 = vsel %vm1579, %v275, %v616
      %v1595 = vsel %vm1579, %v276, %v618
      %v1596 = vsel %vm1579, %v277, %v620
      %v1597 = vsel %vm1579, %v278, %v622
      %v1598 = vsel %vm1579, %v279, %v624
      %v1599 = vsel %vm1579, %v280, %v626
      %v1600 = vsel %vm1579, %v281, %v628
      %v1601 = vsel %vm1579, %v282, %v630
      %v1602 = vsel %vm1579, %v283, %v632
      %v1603 = vsel %vm1579, %v284, %v634
      %v1604 = vsel %vm1579, %v285, %v636
      %v1605 = vsel %vm1579, %v286, %v638
      %v1606 = vsel %vm1579, %v287, %v640
      %v1607 = vsel %vm1579, %v288, %v642
      %v1608 = vsel %vm1579, %v289, %v644
      %v1609 = vsel %vm1579, %v290, %v646
      %v1610 = vsel %vm1579, %v291, %v648
      %v1611 = vsel %vm1579, %v292, %v650
      %vm1612 = vcmask 64512
      %v1613 = vsel %vm1612, %v1580, %v716
      %v1614 = vsel %vm1612, %v1581, %v718
      %v1615 = vsel %vm1612, %v1582, %v720
      %v1616 = vsel %vm1612, %v1583, %v722
      %v1617 = vsel %vm1612, %v1584, %v724
      %v1618 = vsel %vm1612, %v1585, %v726
      %v1619 = vsel %vm1612, %v1586, %v728
      %v1620 = vsel %vm1612, %v1587, %v730
      %v1621 = vsel %vm1612, %v1588, %v732
      %v1622 = vsel %vm1612, %v1589, %v734
      %v1623 = vsel %vm1612, %v1590, %v736
      %v1624 = vsel %vm1612, %v1591, %v738
      %v1625 = vsel %vm1612, %v1592, %v740
      %v1626 = vsel %vm1612, %v1593, %v742
      %v1627 = vsel %vm1612, %v1594, %v744
      %v1628 = vsel %vm1612, %v1595, %v746
      %v1629 = vsel %vm1612, %v1596, %v748
      %v1630 = vsel %vm1612, %v1597, %v750
      %v1631 = vsel %vm1612, %v1598, %v752
      %v1632 = vsel %vm1612, %v1599, %v754
      %v1633 = vsel %vm1612, %v1600, %v756
      %v1634 = vsel %vm1612, %v1601, %v758
      %v1635 = vsel %vm1612, %v1602, %v760
      %v1636 = vsel %vm1612, %v1603, %v762
      %v1637 = vsel %vm1612, %v1604, %v764
      %v1638 = vsel %vm1612, %v1605, %v766
      %v1639 = vsel %vm1612, %v1606, %v768
      %v1640 = vsel %vm1612, %v1607, %v770
      %v1641 = vsel %vm1612, %v1608, %v772
      %v1642 = vsel %vm1612, %v1609, %v774
      %v1643 = vsel %vm1612, %v1610, %v776
      %v1644 = vsel %vm1612, %v1611, %v778
      %vm1645 = vcmask 97280
      %v1646 = vsel %vm1645, %v1613, %v844
      %v1647 = vsel %vm1645, %v1614, %v846
      %v1648 = vsel %vm1645, %v1615, %v848
      %v1649 = vsel %vm1645, %v1616, %v850
      %v1650 = vsel %vm1645, %v1617, %v852
      %v1651 = vsel %vm1645, %v1618, %v854
      %v1652 = vsel %vm1645, %v1619, %v856
      %v1653 = vsel %vm1645, %v1620, %v858
      %v1654 = vsel %vm1645, %v1621, %v860
      %v1655 = vsel %vm1645, %v1622, %v862
      %v1656 = vsel %vm1645, %v1623, %v864
      %v1657 = vsel %vm1645, %v1624, %v866
      %v1658 = vsel %vm1645, %v1625, %v868
      %v1659 = vsel %vm1645, %v1626, %v870
      %v1660 = vsel %vm1645, %v1627, %v872
      %v1661 = vsel %vm1645, %v1628, %v874
      %v1662 = vsel %vm1645, %v1629, %v876
      %v1663 = vsel %vm1645, %v1630, %v878
      %v1664 = vsel %vm1645, %v1631, %v880
      %v1665 = vsel %vm1645, %v1632, %v882
      %v1666 = vsel %vm1645, %v1633, %v884
      %v1667 = vsel %vm1645, %v1634, %v886
      %v1668 = vsel %vm1645, %v1635, %v888
      %v1669 = vsel %vm1645, %v1636, %v890
      %v1670 = vsel %vm1645, %v1637, %v892
      %v1671 = vsel %vm1645, %v1638, %v894
      %v1672 = vsel %vm1645, %v1639, %v896
      %v1673 = vsel %vm1645, %v1640, %v898
      %v1674 = vsel %vm1645, %v1641, %v900
      %v1675 = vsel %vm1645, %v1642, %v902
      %v1676 = vsel %vm1645, %v1643, %v904
      %v1677 = vsel %vm1645, %v1644, %v906
      %vm1678 = vcmask 130048
      %v1679 = vsel %vm1678, %v1646, %v972
      %v1680 = vsel %vm1678, %v1647, %v974
      %v1681 = vsel %vm1678, %v1648, %v976
      %v1682 = vsel %vm1678, %v1649, %v978
      %v1683 = vsel %vm1678, %v1650, %v980
      %v1684 = vsel %vm1678, %v1651, %v982
      %v1685 = vsel %vm1678, %v1652, %v984
      %v1686 = vsel %vm1678, %v1653, %v986
      %v1687 = vsel %vm1678, %v1654, %v988
      %v1688 = vsel %vm1678, %v1655, %v990
      %v1689 = vsel %vm1678, %v1656, %v992
      %v1690 = vsel %vm1678, %v1657, %v994
      %v1691 = vsel %vm1678, %v1658, %v996
      %v1692 = vsel %vm1678, %v1659, %v998
      %v1693 = vsel %vm1678, %v1660, %v1000
      %v1694 = vsel %vm1678, %v1661, %v1002
      %v1695 = vsel %vm1678, %v1662, %v1004
      %v1696 = vsel %vm1678, %v1663, %v1006
      %v1697 = vsel %vm1678, %v1664, %v1008
      %v1698 = vsel %vm1678, %v1665, %v1010
      %v1699 = vsel %vm1678, %v1666, %v1012
      %v1700 = vsel %vm1678, %v1667, %v1014
      %v1701 = vsel %vm1678, %v1668, %v1016
      %v1702 = vsel %vm1678, %v1669, %v1018
      %v1703 = vsel %vm1678, %v1670, %v1020
      %v1704 = vsel %vm1678, %v1671, %v1022
      %v1705 = vsel %vm1678, %v1672, %v1024
      %v1706 = vsel %vm1678, %v1673, %v1026
      %v1707 = vsel %vm1678, %v1674, %v1028
      %v1708 = vsel %vm1678, %v1675, %v1030
      %v1709 = vsel %vm1678, %v1676, %v1032
      %v1710 = vsel %vm1678, %v1677, %v1034
      %vm1711 = vcmask 162816
      %v1712 = vsel %vm1711, %v1679, %v1100
      %v1713 = vsel %vm1711, %v1680, %v1102
      %v1714 = vsel %vm1711, %v1681, %v1104
      %v1715 = vsel %vm1711, %v1682, %v1106
      %v1716 = vsel %vm1711, %v1683, %v1108
      %v1717 = vsel %vm1711, %v1684, %v1110
      %v1718 = vsel %vm1711, %v1685, %v1112
      %v1719 = vsel %vm1711, %v1686, %v1114
      %v1720 = vsel %vm1711, %v1687, %v1116
      %v1721 = vsel %vm1711, %v1688, %v1118
      %v1722 = vsel %vm1711, %v1689, %v1120
      %v1723 = vsel %vm1711, %v1690, %v1122
      %v1724 = vsel %vm1711, %v1691, %v1124
      %v1725 = vsel %vm1711, %v1692, %v1126
      %v1726 = vsel %vm1711, %v1693, %v1128
      %v1727 = vsel %vm1711, %v1694, %v1130
      %v1728 = vsel %vm1711, %v1695, %v1132
      %v1729 = vsel %vm1711, %v1696, %v1134
      %v1730 = vsel %vm1711, %v1697, %v1136
      %v1731 = vsel %vm1711, %v1698, %v1138
      %v1732 = vsel %vm1711, %v1699, %v1140
      %v1733 = vsel %vm1711, %v1700, %v1142
      %v1734 = vsel %vm1711, %v1701, %v1144
      %v1735 = vsel %vm1711, %v1702, %v1146
      %v1736 = vsel %vm1711, %v1703, %v1148
      %v1737 = vsel %vm1711, %v1704, %v1150
      %v1738 = vsel %vm1711, %v1705, %v1152
      %v1739 = vsel %vm1711, %v1706, %v1154
      %v1740 = vsel %vm1711, %v1707, %v1156
      %v1741 = vsel %vm1711, %v1708, %v1158
      %v1742 = vsel %vm1711, %v1709, %v1160
      %v1743 = vsel %vm1711, %v1710, %v1162
      %vm1744 = vcmask 195584
      %v1745 = vsel %vm1744, %v1712, %v1228
      %v1746 = vsel %vm1744, %v1713, %v1230
      %v1747 = vsel %vm1744, %v1714, %v1232
      %v1748 = vsel %vm1744, %v1715, %v1234
      %v1749 = vsel %vm1744, %v1716, %v1236
      %v1750 = vsel %vm1744, %v1717, %v1238
      %v1751 = vsel %vm1744, %v1718, %v1240
      %v1752 = vsel %vm1744, %v1719, %v1242
      %v1753 = vsel %vm1744, %v1720, %v1244
      %v1754 = vsel %vm1744, %v1721, %v1246
      %v1755 = vsel %vm1744, %v1722, %v1248
      %v1756 = vsel %vm1744, %v1723, %v1250
      %v1757 = vsel %vm1744, %v1724, %v1252
      %v1758 = vsel %vm1744, %v1725, %v1254
      %v1759 = vsel %vm1744, %v1726, %v1256
      %v1760 = vsel %vm1744, %v1727, %v1258
      %v1761 = vsel %vm1744, %v1728, %v1260
      %v1762 = vsel %vm1744, %v1729, %v1262
      %v1763 = vsel %vm1744, %v1730, %v1264
      %v1764 = vsel %vm1744, %v1731, %v1266
      %v1765 = vsel %vm1744, %v1732, %v1268
      %v1766 = vsel %vm1744, %v1733, %v1270
      %v1767 = vsel %vm1744, %v1734, %v1272
      %v1768 = vsel %vm1744, %v1735, %v1274
      %v1769 = vsel %vm1744, %v1736, %v1276
      %v1770 = vsel %vm1744, %v1737, %v1278
      %v1771 = vsel %vm1744, %v1738, %v1280
      %v1772 = vsel %vm1744, %v1739, %v1282
      %v1773 = vsel %vm1744, %v1740, %v1284
      %v1774 = vsel %vm1744, %v1741, %v1286
      %v1775 = vsel %vm1744, %v1742, %v1288
      %v1776 = vsel %vm1744, %v1743, %v1290
      %vm1777 = vcmask 228352
      %v1778 = vsel %vm1777, %v1745, %v1356
      %v1779 = vsel %vm1777, %v1746, %v1358
      %v1780 = vsel %vm1777, %v1747, %v1360
      %v1781 = vsel %vm1777, %v1748, %v1362
      %v1782 = vsel %vm1777, %v1749, %v1364
      %v1783 = vsel %vm1777, %v1750, %v1366
      %v1784 = vsel %vm1777, %v1751, %v1368
      %v1785 = vsel %vm1777, %v1752, %v1370
      %v1786 = vsel %vm1777, %v1753, %v1372
      %v1787 = vsel %vm1777, %v1754, %v1374
      %v1788 = vsel %vm1777, %v1755, %v1376
      %v1789 = vsel %vm1777, %v1756, %v1378
      %v1790 = vsel %vm1777, %v1757, %v1380
      %v1791 = vsel %vm1777, %v1758, %v1382
      %v1792 = vsel %vm1777, %v1759, %v1384
      %v1793 = vsel %vm1777, %v1760, %v1386
      %v1794 = vsel %vm1777, %v1761, %v1388
      %v1795 = vsel %vm1777, %v1762, %v1390
      %v1796 = vsel %vm1777, %v1763, %v1392
      %v1797 = vsel %vm1777, %v1764, %v1394
      %v1798 = vsel %vm1777, %v1765, %v1396
      %v1799 = vsel %vm1777, %v1766, %v1398
      %v1800 = vsel %vm1777, %v1767, %v1400
      %v1801 = vsel %vm1777, %v1768, %v1402
      %v1802 = vsel %vm1777, %v1769, %v1404
      %v1803 = vsel %vm1777, %v1770, %v1406
      %v1804 = vsel %vm1777, %v1771, %v1408
      %v1805 = vsel %vm1777, %v1772, %v1410
      %v1806 = vsel %vm1777, %v1773, %v1412
      %v1807 = vsel %vm1777, %v1774, %v1414
      %v1808 = vsel %vm1777, %v1775, %v1416
      %v1809 = vsel %vm1777, %v1776, %v1418
      %vm1810 = vcmask 261120
      %v1811 = vsel %vm1810, %v1778, %v1484
      %v1812 = vsel %vm1810, %v1779, %v1486
      %v1813 = vsel %vm1810, %v1780, %v1488
      %v1814 = vsel %vm1810, %v1781, %v1490
      %v1815 = vsel %vm1810, %v1782, %v1492
      %v1816 = vsel %vm1810, %v1783, %v1494
      %v1817 = vsel %vm1810, %v1784, %v1496
      %v1818 = vsel %vm1810, %v1785, %v1498
      %v1819 = vsel %vm1810, %v1786, %v1500
      %v1820 = vsel %vm1810, %v1787, %v1502
      %v1821 = vsel %vm1810, %v1788, %v1504
      %v1822 = vsel %vm1810, %v1789, %v1506
      %v1823 = vsel %vm1810, %v1790, %v1508
      %v1824 = vsel %vm1810, %v1791, %v1510
      %v1825 = vsel %vm1810, %v1792, %v1512
      %v1826 = vsel %vm1810, %v1793, %v1514
      %v1827 = vsel %vm1810, %v1794, %v1516
      %v1828 = vsel %vm1810, %v1795, %v1518
      %v1829 = vsel %vm1810, %v1796, %v1520
      %v1830 = vsel %vm1810, %v1797, %v1522
      %v1831 = vsel %vm1810, %v1798, %v1524
      %v1832 = vsel %vm1810, %v1799, %v1526
      %v1833 = vsel %vm1810, %v1800, %v1528
      %v1834 = vsel %vm1810, %v1801, %v1530
      %v1835 = vsel %vm1810, %v1802, %v1532
      %v1836 = vsel %vm1810, %v1803, %v1534
      %v1837 = vsel %vm1810, %v1804, %v1536
      %v1838 = vsel %vm1810, %v1805, %v1538
      %v1839 = vsel %vm1810, %v1806, %v1540
      %v1840 = vsel %vm1810, %v1807, %v1542
      %v1841 = vsel %vm1810, %v1808, %v1544
      %v1842 = vsel %vm1810, %v1809, %v1546
      %v1843 = vld [vmem:[%s1] sm:$0xff]
      %v1844 = vld [vmem:[%s1 + $0x8] sm:$0xff]
      %v1845 = vld [vmem:[%s1 + $0x10] sm:$0xff]
      %v1846 = vld [vmem:[%s1 + $0x18] sm:$0xff]
      %v1847 = vld [vmem:[%s1 + $0x20] sm:$0xf]
      %vm1848 = vcmask 293888
      %v1850 = vsel %vm1848, %v1811, 0
      %v1853 = vsel %vm1848, %v1812, 0
      %v1856 = vsel %vm1848, %v1813, 0
      %v1859 = vsel %vm1848, %v1814, 0
      %v1862 = vsel %vm1848, %v1815, 0
      %v1865 = vsel %vm1848, %v1816, 0
      %v1868 = vsel %vm1848, %v1817, 0
      %v1871 = vsel %vm1848, %v1818, 0
      %v1874 = vsel %vm1848, %v1819, 0
      %v1877 = vsel %vm1848, %v1820, 0
      %v1880 = vsel %vm1848, %v1821, 0
      %v1883 = vsel %vm1848, %v1822, 0
      %v1886 = vsel %vm1848, %v1823, 0
      %v1889 = vsel %vm1848, %v1824, 0
      %v1892 = vsel %vm1848, %v1825, 0
      %v1895 = vsel %vm1848, %v1826, 0
      %v1898 = vsel %vm1848, %v1827, 0
      %v1901 = vsel %vm1848, %v1828, 0
      %v1904 = vsel %vm1848, %v1829, 0
      %v1907 = vsel %vm1848, %v1830, 0
      %v1910 = vsel %vm1848, %v1831, 0
      %v1913 = vsel %vm1848, %v1832, 0
      %v1916 = vsel %vm1848, %v1833, 0
      %v1919 = vsel %vm1848, %v1834, 0
      %v1922 = vsel %vm1848, %v1835, 0
      %v1925 = vsel %vm1848, %v1836, 0
      %v1928 = vsel %vm1848, %v1837, 0
      %v1931 = vsel %vm1848, %v1838, 0
      %v1934 = vsel %vm1848, %v1839, 0
      %v1937 = vsel %vm1848, %v1840, 0
      %v1940 = vsel %vm1848, %v1841, 0
      %v1943 = vsel %vm1848, %v1842, 0
      %vm1945 = vcmask 1043456
      %v1947 = vsel %vm1945, %v1847, 0
      %1949 = vmatprep.subr.mxu0 0.0
      %1950 = vmatpush1.msra.mxu0 %v1843
      %1951 = vmatprep.subr.mxu0 0.0
      %1952 = vmatpush1.msra.mxu0 %v1844
      %1953 = vmatprep.subr.mxu0 0.0
      %1954 = vmatpush1.msra.mxu0 %v1845
      %1955 = vmatprep.subr.mxu0 0.0
      %1956 = vmatpush1.msra.mxu0 %v1846
      %1957 = vmatprep.subr.mxu0 0.0
      %1958 = vmatpush1.msra.mxu0 %v1947
      %1959 = vmatprep.subr.mxu0 0.0
      %1960 = vmatpush1.msra.mxu0 0.0
      %1961 = vmatprep.subr.mxu0 0.0
      %1962 = vmatpush1.msra.mxu0 0.0
      %1963 = vmatprep.subr.mxu0 0.0
      %1964 = vmatpush1.msra.mxu0 0.0
      %1965 = vmatprep.subr.mxu0 0.0
      %1966 = vmatpush1.msra.mxu0 0.0
      %1967 = vmatprep.subr.mxu0 0.0
      %1968 = vmatpush1.msra.mxu0 0.0
      %1969 = vmatprep.subr.mxu0 0.0
      %1970 = vmatpush1.msra.mxu0 0.0
      %1971 = vmatprep.subr.mxu0 0.0
      %1972 = vmatpush1.msra.mxu0 0.0
      %1973 = vmatprep.subr.mxu0 0.0
      %1974 = vmatpush1.msra.mxu0 0.0
      %1975 = vmatprep.subr.mxu0 0.0
      %1976 = vmatpush1.msra.mxu0 0.0
      %1977 = vmatprep.subr.mxu0 0.0
      %1978 = vmatpush1.msra.mxu0 0.0
      %1979 = vmatprep.subr.mxu0 0.0
      %1980 = vmatpush1.msra.mxu0 0.0
      %1981 = vmatprep.subr.mxu0 0.0
      %1982 = vmatpush1.msra.mxu0 0.0
      %1983 = vmatprep.subr.mxu0 0.0
      %1984 = vmatpush1.msra.mxu0 0.0
      %1985 = vmatprep.subr.mxu0 0.0
      %1986 = vmatpush1.msra.mxu0 0.0
      %1987 = vmatprep.subr.mxu0 0.0
      %1988 = vmatpush1.msra.mxu0 0.0
      %1989 = vmatprep.subr.mxu0 0.0
      %1990 = vmatpush1.msra.mxu0 0.0
      %1991 = vmatprep.subr.mxu0 0.0
      %1992 = vmatpush1.msra.mxu0 0.0
      %1993 = vmatprep.subr.mxu0 0.0
      %1994 = vmatpush1.msra.mxu0 0.0
      %1995 = vmatprep.subr.mxu0 0.0
      %1996 = vmatpush1.msra.mxu0 0.0
      %1997 = vmatprep.subr.mxu0 0.0
      %1998 = vmatpush1.msra.mxu0 0.0
      %1999 = vmatprep.subr.mxu0 0.0
      %2000 = vmatpush1.msra.mxu0 0.0
      %2001 = vmatprep.subr.mxu0 0.0
      %2002 = vmatpush1.msra.mxu0 0.0
      %2003 = vmatprep.subr.mxu0 0.0
      %2004 = vmatpush1.msra.mxu0 0.0
      %2005 = vmatprep.subr.mxu0 0.0
      %2006 = vmatpush1.msra.mxu0 0.0
      %2007 = vmatprep.subr.mxu0 0.0
      %2008 = vmatpush1.msra.mxu0 0.0
      %2009 = vmatprep.subr.mxu0 0.0
      %2010 = vmatpush1.msra.mxu0 0.0
      %2011 = vmatprep.subr.mxu0 0.0
      %2012 = vmatpush1.msra.mxu0 0.0
      %2013 = vmatprep.mubr.f32.mxu0 0.0
      %2014 = vmatmul.mubr.f32.gmra.mrb[0].mxu0 %v1850
      %v2015 = vpop.f32.mrb[0].mxu0
      %v2016 = vadd.f32 0.0, %v2015
      %v2017 = vpop.f32.mrb[0].mxu0
      %2018 = vmatprep.mubr.f32.mxu0 0.0
      %2019 = vmatmul.mubr.f32.gmra.mrb[0].mxu0 %v1853
      %v2020 = vpop.f32.mrb[0].mxu0
      %v2021 = vadd.f32 0.0, %v2020
      %v2022 = vpop.f32.mrb[0].mxu0
      %2023 = vmatprep.mubr.f32.mxu0 0.0
      %2024 = vmatmul.mubr.f32.gmra.mrb[0].mxu0 %v1856
      %v2025 = vpop.f32.mrb[0].mxu0
      %v2026 = vadd.f32 0.0, %v2025
      %v2027 = vpop.f32.mrb[0].mxu0
      %2028 = vmatprep.mubr.f32.mxu0 0.0
      %2029 = vmatmul.mubr.f32.gmra.mrb[0].mxu0 %v1859
      %v2030 = vpop.f32.mrb[0].mxu0
      %v2031 = vadd.f32 0.0, %v2030
      %v2032 = vpop.f32.mrb[0].mxu0
      %2033 = vmatprep.mubr.f32.mxu0 0.0
      %2034 = vmatmul.mubr.f32.gmra.mrb[0].mxu0 %v1862
      %v2035 = vpop.f32.mrb[0].mxu0
      %v2036 = vadd.f32 0.0, %v2035
      %v2037 = vpop.f32.mrb[0].mxu0
      %2038 = vmatprep.mubr.f32.mxu0 0.0
      %2039 = vmatmul.mubr.f32.gmra.mrb[0].mxu0 %v1865
      %v2040 = vpop.f32.mrb[0].mxu0
      %v2041 = vadd.f32 0.0, %v2040
      %v2042 = vpop.f32.mrb[0].mxu0
      %2043 = vmatprep.mubr.f32.mxu0 0.0
      %2044 = vmatmul.mubr.f32.gmra.mrb[0].mxu0 %v1868
      %v2045 = vpop.f32.mrb[0].mxu0
      %v2046 = vadd.f32 0.0, %v2045
      %v2047 = vpop.f32.mrb[0].mxu0
      %2048 = vmatprep.mubr.f32.mxu0 0.0
      %2049 = vmatmul.mubr.f32.gmra.mrb[0].mxu0 %v1871
      %v2050 = vpop.f32.mrb[0].mxu0
      %v2051 = vadd.f32 0.0, %v2050
      %v2052 = vpop.f32.mrb[0].mxu0
      %2053 = vmatprep.mubr.f32.mxu0 0.0
      %2054 = vmatmul.mubr.f32.gmra.mrb[0].mxu0 %v1874
      %v2055 = vpop.f32.mrb[0].mxu0
      %v2056 = vadd.f32 0.0, %v2055
      %v2057 = vpop.f32.mrb[0].mxu0
      %2058 = vmatprep.mubr.f32.mxu0 0.0
      %2059 = vmatmul.mubr.f32.gmra.mrb[0].mxu0 %v1877
      %v2060 = vpop.f32.mrb[0].mxu0
      %v2061 = vadd.f32 0.0, %v2060
      %v2062 = vpop.f32.mrb[0].mxu0
      %2063 = vmatprep.mubr.f32.mxu0 0.0
      %2064 = vmatmul.mubr.f32.gmra.mrb[0].mxu0 %v1880
      %v2065 = vpop.f32.mrb[0].mxu0
      %v2066 = vadd.f32 0.0, %v2065
      %v2067 = vpop.f32.mrb[0].mxu0
      %2068 = vmatprep.mubr.f32.mxu0 0.0
      %2069 = vmatmul.mubr.f32.gmra.mrb[0].mxu0 %v1883
      %v2070 = vpop.f32.mrb[0].mxu0
      %v2071 = vadd.f32 0.0, %v2070
      %v2072 = vpop.f32.mrb[0].mxu0
      %2073 = vmatprep.mubr.f32.mxu0 0.0
      %2074 = vmatmul.mubr.f32.gmra.mrb[0].mxu0 %v1886
      %v2075 = vpop.f32.mrb[0].mxu0
      %v2076 = vadd.f32 0.0, %v2075
      %v2077 = vpop.f32.mrb[0].mxu0
      %2078 = vmatprep.mubr.f32.mxu0 0.0
      %2079 = vmatmul.mubr.f32.gmra.mrb[0].mxu0 %v1889
      %v2080 = vpop.f32.mrb[0].mxu0
      %v2081 = vadd.f32 0.0, %v2080
      %v2082 = vpop.f32.mrb[0].mxu0
      %2083 = vmatprep.mubr.f32.mxu0 0.0
      %2084 = vmatmul.mubr.f32.gmra.mrb[0].mxu0 %v1892
      %v2085 = vpop.f32.mrb[0].mxu0
      %v2086 = vadd.f32 0.0, %v2085
      %v2087 = vpop.f32.mrb[0].mxu0
      %2088 = vmatprep.mubr.f32.mxu0 0.0
      %2089 = vmatmul.mubr.f32.gmra.mrb[0].mxu0 %v1895
      %v2090 = vpop.f32.mrb[0].mxu0
      %v2091 = vadd.f32 0.0, %v2090
      %v2092 = vpop.f32.mrb[0].mxu0
      %2093 = vmatprep.mubr.f32.mxu0 0.0
      %2094 = vmatmul.mubr.f32.gmra.mrb[0].mxu0 %v1898
      %v2095 = vpop.f32.mrb[0].mxu0
      %v2096 = vadd.f32 0.0, %v2095
      %v2097 = vpop.f32.mrb[0].mxu0
      %2098 = vmatprep.mubr.f32.mxu0 0.0
      %2099 = vmatmul.mubr.f32.gmra.mrb[0].mxu0 %v1901
      %v2100 = vpop.f32.mrb[0].mxu0
      %v2101 = vadd.f32 0.0, %v2100
      %v2102 = vpop.f32.mrb[0].mxu0
      %2103 = vmatprep.mubr.f32.mxu0 0.0
      %2104 = vmatmul.mubr.f32.gmra.mrb[0].mxu0 %v1904
      %v2105 = vpop.f32.mrb[0].mxu0
      %v2106 = vadd.f32 0.0, %v2105
      %v2107 = vpop.f32.mrb[0].mxu0
      %2108 = vmatprep.mubr.f32.mxu0 0.0
      %2109 = vmatmul.mubr.f32.gmra.mrb[0].mxu0 %v1907
      %v2110 = vpop.f32.mrb[0].mxu0
      %v2111 = vadd.f32 0.0, %v2110
      %v2112 = vpop.f32.mrb[0].mxu0
      %2113 = vmatprep.mubr.f32.mxu0 0.0
      %2114 = vmatmul.mubr.f32.gmra.mrb[0].mxu0 %v1910
      %v2115 = vpop.f32.mrb[0].mxu0
      %v2116 = vadd.f32 0.0, %v2115
      %v2117 = vpop.f32.mrb[0].mxu0
      %2118 = vmatprep.mubr.f32.mxu0 0.0
      %2119 = vmatmul.mubr.f32.gmra.mrb[0].mxu0 %v1913
      %v2120 = vpop.f32.mrb[0].mxu0
      %v2121 = vadd.f32 0.0, %v2120
      %v2122 = vpop.f32.mrb[0].mxu0
      %2123 = vmatprep.mubr.f32.mxu0 0.0
      %2124 = vmatmul.mubr.f32.gmra.mrb[0].mxu0 %v1916
      %v2125 = vpop.f32.mrb[0].mxu0
      %v2126 = vadd.f32 0.0, %v2125
      %v2127 = vpop.f32.mrb[0].mxu0
      %2128 = vmatprep.mubr.f32.mxu0 0.0
      %2129 = vmatmul.mubr.f32.gmra.mrb[0].mxu0 %v1919
      %v2130 = vpop.f32.mrb[0].mxu0
      %v2131 = vadd.f32 0.0, %v2130
      %v2132 = vpop.f32.mrb[0].mxu0
      %2133 = vmatprep.mubr.f32.mxu0 0.0
      %2134 = vmatmul.mubr.f32.gmra.mrb[0].mxu0 %v1922
      %v2135 = vpop.f32.mrb[0].mxu0
      %v2136 = vadd.f32 0.0, %v2135
      %v2137 = vpop.f32.mrb[0].mxu0
      %2138 = vmatprep.mubr.f32.mxu0 0.0
      %2139 = vmatmul.mubr.f32.gmra.mrb[0].mxu0 %v1925
      %v2140 = vpop.f32.mrb[0].mxu0
      %v2141 = vadd.f32 0.0, %v2140
      %v2142 = vpop.f32.mrb[0].mxu0
      %2143 = vmatprep.mubr.f32.mxu0 0.0
      %2144 = vmatmul.mubr.f32.gmra.mrb[0].mxu0 %v1928
      %v2145 = vpop.f32.mrb[0].mxu0
      %v2146 = vadd.f32 0.0, %v2145
      %v2147 = vpop.f32.mrb[0].mxu0
      %2148 = vmatprep.mubr.f32.mxu0 0.0
      %2149 = vmatmul.mubr.f32.gmra.mrb[0].mxu0 %v1931
      %v2150 = vpop.f32.mrb[0].mxu0
      %v2151 = vadd.f32 0.0, %v2150
      %v2152 = vpop.f32.mrb[0].mxu0
      %2153 = vmatprep.mubr.f32.mxu0 0.0
      %2154 = vmatmul.mubr.f32.gmra.mrb[0].mxu0 %v1934
      %v2155 = vpop.f32.mrb[0].mxu0
      %v2156 = vadd.f32 0.0, %v2155
      %v2157 = vpop.f32.mrb[0].mxu0
      %2158 = vmatprep.mubr.f32.mxu0 0.0
      %2159 = vmatmul.mubr.f32.gmra.mrb[0].mxu0 %v1937
      %v2160 = vpop.f32.mrb[0].mxu0
      %v2161 = vadd.f32 0.0, %v2160
      %v2162 = vpop.f32.mrb[0].mxu0
      %2163 = vmatprep.mubr.f32.mxu0 0.0
      %2164 = vmatmul.mubr.f32.gmra.mrb[0].mxu0 %v1940
      %v2165 = vpop.f32.mrb[0].mxu0
      %v2166 = vadd.f32 0.0, %v2165
      %v2167 = vpop.f32.mrb[0].mxu0
      %2168 = vmatprep.mubr.f32.mxu0 0.0
      %2169 = vmatmul.mubr.f32.gmra.mrb[0].mxu0 %v1943
      %v2170 = vpop.f32.mrb[0].mxu0
      %v2171 = vadd.f32 0.0, %v2170
      %v2172 = vpop.f32.mrb[0].mxu0
      %2173 = vdwg.mxu0
      %2174 = vst.msk [vmem:[%s242] sm:$0xff] %vm1612, %v2016
      %2175 = vst.msk [vmem:[%s242 + $0x8] sm:$0xff] %vm1612, %v2021
      %2176 = vst.msk [vmem:[%s242 + $0x10] sm:$0xff] %vm1612, %v2026
      %2177 = vst.msk [vmem:[%s242 + $0x18] sm:$0xff] %vm1612, %v2031
      %2178 = vst.msk [vmem:[%s242 + $0x20] sm:$0xff] %vm1612, %v2036
      %2179 = vst.msk [vmem:[%s242 + $0x28] sm:$0xff] %vm1612, %v2041
      %2180 = vst.msk [vmem:[%s242 + $0x30] sm:$0xff] %vm1612, %v2046
      %2181 = vst.msk [vmem:[%s242 + $0x38] sm:$0xff] %vm1612, %v2051
      %2182 = vst.msk [vmem:[%s242 + $0x40] sm:$0xff] %vm1612, %v2056
      %2183 = vst.msk [vmem:[%s242 + $0x48] sm:$0xff] %vm1612, %v2061
      %2184 = vst.msk [vmem:[%s242 + $0x50] sm:$0xff] %vm1612, %v2066
      %2185 = vst.msk [vmem:[%s242 + $0x58] sm:$0xff] %vm1612, %v2071
      %2186 = vst.msk [vmem:[%s242 + $0x60] sm:$0xff] %vm1612, %v2076
      %2187 = vst.msk [vmem:[%s242 + $0x68] sm:$0xff] %vm1612, %v2081
      %2188 = vst.msk [vmem:[%s242 + $0x70] sm:$0xff] %vm1612, %v2086
      %2189 = vst.msk [vmem:[%s242 + $0x78] sm:$0xff] %vm1612, %v2091
      %2190 = vst.msk [vmem:[%s242 + $0x80] sm:$0xff] %vm1612, %v2096
      %2191 = vst.msk [vmem:[%s242 + $0x88] sm:$0xff] %vm1612, %v2101
      %2192 = vst.msk [vmem:[%s242 + $0x90] sm:$0xff] %vm1612, %v2106
      %2193 = vst.msk [vmem:[%s242 + $0x98] sm:$0xff] %vm1612, %v2111
      %2194 = vst.msk [vmem:[%s242 + $0xa0] sm:$0xff] %vm1612, %v2116
      %2195 = vst.msk [vmem:[%s242 + $0xa8] sm:$0xff] %vm1612, %v2121
      %2196 = vst.msk [vmem:[%s242 + $0xb0] sm:$0xff] %vm1612, %v2126
      %2197 = vst.msk [vmem:[%s242 + $0xb8] sm:$0xff] %vm1612, %v2131
      %2198 = vst.msk [vmem:[%s242 + $0xc0] sm:$0xff] %vm1612, %v2136
      %2199 = vst.msk [vmem:[%s242 + $0xc8] sm:$0xff] %vm1612, %v2141
      %2200 = vst.msk [vmem:[%s242 + $0xd0] sm:$0xff] %vm1612, %v2146
      %2201 = vst.msk [vmem:[%s242 + $0xd8] sm:$0xff] %vm1612, %v2151
      %2202 = vst.msk [vmem:[%s242 + $0xe0] sm:$0xff] %vm1612, %v2156
      %2203 = vst.msk [vmem:[%s242 + $0xe8] sm:$0xff] %vm1612, %v2161
      %2204 = vst.msk [vmem:[%s242 + $0xf0] sm:$0xff] %vm1612, %v2166
      %2205 = vst.msk [vmem:[%s242 + $0xf8] sm:$0xff] %vm1612, %v2171
      %v2206 = vsel %vm1612, %v2016, 0.0
      %v2207 = vsel %vm1612, %v2021, 0.0
      %v2208 = vadd.f32 %v2206, %v2207
      %v2209 = vsel %vm1612, %v2026, 0.0
      %v2210 = vadd.f32 %v2208, %v2209
      %v2211 = vsel %vm1612, %v2031, 0.0
      %v2212 = vadd.f32 %v2210, %v2211
      %v2213 = vsel %vm1612, %v2036, 0.0
      %v2214 = vadd.f32 %v2212, %v2213
      %v2215 = vsel %vm1612, %v2041, 0.0
      %v2216 = vadd.f32 %v2214, %v2215
      %v2217 = vsel %vm1612, %v2046, 0.0
      %v2218 = vadd.f32 %v2216, %v2217
      %v2219 = vsel %vm1612, %v2051, 0.0
      %v2220 = vadd.f32 %v2218, %v2219
      %v2221 = vsel %vm1612, %v2056, 0.0
      %v2222 = vadd.f32 %v2220, %v2221
      %v2223 = vsel %vm1612, %v2061, 0.0
      %v2224 = vadd.f32 %v2222, %v2223
      %v2225 = vsel %vm1612, %v2066, 0.0
      %v2226 = vadd.f32 %v2224, %v2225
      %v2227 = vsel %vm1612, %v2071, 0.0
      %v2228 = vadd.f32 %v2226, %v2227
      %v2229 = vsel %vm1612, %v2076, 0.0
      %v2230 = vadd.f32 %v2228, %v2229
      %v2231 = vsel %vm1612, %v2081, 0.0
      %v2232 = vadd.f32 %v2230, %v2231
      %v2233 = vsel %vm1612, %v2086, 0.0
      %v2234 = vadd.f32 %v2232, %v2233
      %v2235 = vsel %vm1612, %v2091, 0.0
      %v2236 = vadd.f32 %v2234, %v2235
      %v2237 = vsel %vm1612, %v2096, 0.0
      %v2238 = vadd.f32 %v2236, %v2237
      %v2239 = vsel %vm1612, %v2101, 0.0
      %v2240 = vadd.f32 %v2238, %v2239
      %v2241 = vsel %vm1612, %v2106, 0.0
      %v2242 = vadd.f32 %v2240, %v2241
      %v2243 = vsel %vm1612, %v2111, 0.0
      %v2244 = vadd.f32 %v2242, %v2243
      %v2245 = vsel %vm1612, %v2116, 0.0
      %v2246 = vadd.f32 %v2244, %v2245
      %v2247 = vsel %vm1612, %v2121, 0.0
      %v2248 = vadd.f32 %v2246, %v2247
      %v2249 = vsel %vm1612, %v2126, 0.0
      %v2250 = vadd.f32 %v2248, %v2249
      %v2251 = vsel %vm1612, %v2131, 0.0
      %v2252 = vadd.f32 %v2250, %v2251
      %v2253 = vsel %vm1612, %v2136, 0.0
      %v2254 = vadd.f32 %v2252, %v2253
      %v2255 = vsel %vm1612, %v2141, 0.0
      %v2256 = vadd.f32 %v2254, %v2255
      %v2257 = vsel %vm1612, %v2146, 0.0
      %v2258 = vadd.f32 %v2256, %v2257
      %v2259 = vsel %vm1612, %v2151, 0.0
      %v2260 = vadd.f32 %v2258, %v2259
      %v2261 = vsel %vm1612, %v2156, 0.0
      %v2262 = vadd.f32 %v2260, %v2261
      %v2263 = vsel %vm1612, %v2161, 0.0
      %v2264 = vadd.f32 %v2262, %v2263
      %v2265 = vsel %vm1612, %v2166, 0.0
      %v2266 = vadd.f32 %v2264, %v2265
      %v2267 = vsel %vm1612, %v2171, 0.0
      %v2268 = vadd.f32 %v2266, %v2267
      %v2269 = vrot.slane %v2268, 4
      %v2270 = vadd.f32 %v2268, %v2269
      %v2271 = vrot.slane %v2270, 2
      %v2272 = vadd.f32 %v2270, %v2271
      %v2273 = vrot.slane %v2272, 1
      %v2274 = vadd.f32 %v2272, %v2273
      %v2275 = vmul.f32 %v2274, 0.00390625
      %v2276 = vsub.f32 %v2016, %v2275
      %v2277 = vsub.f32 %v2021, %v2275
      %v2278 = vsub.f32 %v2026, %v2275
      %v2279 = vsub.f32 %v2031, %v2275
      %v2280 = vsub.f32 %v2036, %v2275
      %v2281 = vsub.f32 %v2041, %v2275
      %v2282 = vsub.f32 %v2046, %v2275
      %v2283 = vsub.f32 %v2051, %v2275
      %v2284 = vsub.f32 %v2056, %v2275
      %v2285 = vsub.f32 %v2061, %v2275
      %v2286 = vsub.f32 %v2066, %v2275
      %v2287 = vsub.f32 %v2071, %v2275
      %v2288 = vsub.f32 %v2076, %v2275
      %v2289 = vsub.f32 %v2081, %v2275
      %v2290 = vsub.f32 %v2086, %v2275
      %v2291 = vsub.f32 %v2091, %v2275
      %v2292 = vsub.f32 %v2096, %v2275
      %v2293 = vsub.f32 %v2101, %v2275
      %v2294 = vsub.f32 %v2106, %v2275
      %v2295 = vsub.f32 %v2111, %v2275
      %v2296 = vsub.f32 %v2116, %v2275
      %v2297 = vsub.f32 %v2121, %v2275
      %v2298 = vsub.f32 %v2126, %v2275
      %v2299 = vsub.f32 %v2131, %v2275
      %v2300 = vsub.f32 %v2136, %v2275
      %v2301 = vsub.f32 %v2141, %v2275
      %v2302 = vsub.f32 %v2146, %v2275
      %v2303 = vsub.f32 %v2151, %v2275
      %v2304 = vsub.f32 %v2156, %v2275
      %v2305 = vsub.f32 %v2161, %v2275
      %v2306 = vsub.f32 %v2166, %v2275
      %v2307 = vsub.f32 %v2171, %v2275
      %v2308 = vmul.f32 %v2276, %v2276
      %v2309 = vmul.f32 %v2277, %v2277
      %v2310 = vmul.f32 %v2278, %v2278
      %v2311 = vmul.f32 %v2279, %v2279
      %v2312 = vmul.f32 %v2280, %v2280
      %v2313 = vmul.f32 %v2281, %v2281
      %v2314 = vmul.f32 %v2282, %v2282
      %v2315 = vmul.f32 %v2283, %v2283
      %v2316 = vmul.f32 %v2284, %v2284
      %v2317 = vmul.f32 %v2285, %v2285
      %v2318 = vmul.f32 %v2286, %v2286
      %v2319 = vmul.f32 %v2287, %v2287
      %v2320 = vmul.f32 %v2288, %v2288
      %v2321 = vmul.f32 %v2289, %v2289
      %v2322 = vmul.f32 %v2290, %v2290
      %v2323 = vmul.f32 %v2291, %v2291
      %v2324 = vmul.f32 %v2292, %v2292
      %v2325 = vmul.f32 %v2293, %v2293
      %v2326 = vmul.f32 %v2294, %v2294
      %v2327 = vmul.f32 %v2295, %v2295
      %v2328 = vmul.f32 %v2296, %v2296
      %v2329 = vmul.f32 %v2297, %v2297
      %v2330 = vmul.f32 %v2298, %v2298
      %v2331 = vmul.f32 %v2299, %v2299
      %v2332 = vmul.f32 %v2300, %v2300
      %v2333 = vmul.f32 %v2301, %v2301
      %v2334 = vmul.f32 %v2302, %v2302
      %v2335 = vmul.f32 %v2303, %v2303
      %v2336 = vmul.f32 %v2304, %v2304
      %v2337 = vmul.f32 %v2305, %v2305
      %v2338 = vmul.f32 %v2306, %v2306
      %v2339 = vmul.f32 %v2307, %v2307
      %v2340 = vsel %vm1612, %v2308, 0.0
      %v2341 = vsel %vm1612, %v2309, 0.0
      %v2342 = vadd.f32 %v2340, %v2341
      %v2343 = vsel %vm1612, %v2310, 0.0
      %v2344 = vadd.f32 %v2342, %v2343
      %v2345 = vsel %vm1612, %v2311, 0.0
      %v2346 = vadd.f32 %v2344, %v2345
      %v2347 = vsel %vm1612, %v2312, 0.0
      %v2348 = vadd.f32 %v2346, %v2347
      %v2349 = vsel %vm1612, %v2313, 0.0
      %v2350 = vadd.f32 %v2348, %v2349
      %v2351 = vsel %vm1612, %v2314, 0.0
      %v2352 = vadd.f32 %v2350, %v2351
      %v2353 = vsel %vm1612, %v2315, 0.0
      %v2354 = vadd.f32 %v2352, %v2353
      %v2355 = vsel %vm1612, %v2316, 0.0
      %v2356 = vadd.f32 %v2354, %v2355
      %v2357 = vsel %vm1612, %v2317, 0.0
      %v2358 = vadd.f32 %v2356, %v2357
      %v2359 = vsel %vm1612, %v2318, 0.0
      %v2360 = vadd.f32 %v2358, %v2359
      %v2361 = vsel %vm1612, %v2319, 0.0
      %v2362 = vadd.f32 %v2360, %v2361
      %v2363 = vsel %vm1612, %v2320, 0.0
      %v2364 = vadd.f32 %v2362, %v2363
      %v2365 = vsel %vm1612, %v2321, 0.0
      %v2366 = vadd.f32 %v2364, %v2365
      %v2367 = vsel %vm1612, %v2322, 0.0
      %v2368 = vadd.f32 %v2366, %v2367
      %v2369 = vsel %vm1612, %v2323, 0.0
      %v2370 = vadd.f32 %v2368, %v2369
      %v2371 = vsel %vm1612, %v2324, 0.0
      %v2372 = vadd.f32 %v2370, %v2371
      %v2373 = vsel %vm1612, %v2325, 0.0
      %v2374 = vadd.f32 %v2372, %v2373
      %v2375 = vsel %vm1612, %v2326, 0.0
      %v2376 = vadd.f32 %v2374, %v2375
      %v2377 = vsel %vm1612, %v2327, 0.0
      %v2378 = vadd.f32 %v2376, %v2377
      %v2379 = vsel %vm1612, %v2328, 0.0
      %v2380 = vadd.f32 %v2378, %v2379
      %v2381 = vsel %vm1612, %v2329, 0.0
      %v2382 = vadd.f32 %v2380, %v2381
      %v2383 = vsel %vm1612, %v2330, 0.0
      %v2384 = vadd.f32 %v2382, %v2383
      %v2385 = vsel %vm1612, %v2331, 0.0
      %v2386 = vadd.f32 %v2384, %v2385
      %v2387 = vsel %vm1612, %v2332, 0.0
      %v2388 = vadd.f32 %v2386, %v2387
      %v2389 = vsel %vm1612, %v2333, 0.0
      %v2390 = vadd.f32 %v2388, %v2389
      %v2391 = vsel %vm1612, %v2334, 0.0
      %v2392 = vadd.f32 %v2390, %v2391
      %v2393 = vsel %vm1612, %v2335, 0.0
      %v2394 = vadd.f32 %v2392, %v2393
      %v2395 = vsel %vm1612, %v2336, 0.0
      %v2396 = vadd.f32 %v2394, %v2395
      %v2397 = vsel %vm1612, %v2337, 0.0
      %v2398 = vadd.f32 %v2396, %v2397
      %v2399 = vsel %vm1612, %v2338, 0.0
      %v2400 = vadd.f32 %v2398, %v2399
      %v2401 = vsel %vm1612, %v2339, 0.0
      %v2402 = vadd.f32 %v2400, %v2401
      %v2403 = vrot.slane %v2402, 4
      %v2404 = vadd.f32 %v2402, %v2403
      %v2405 = vrot.slane %v2404, 2
      %v2406 = vadd.f32 %v2404, %v2405
      %v2407 = vrot.slane %v2406, 1
      %v2408 = vadd.f32 %v2406, %v2407
      %2409 = vst.msk [vmem:[%s250] sm:$0xff] %vm1612, %v2274
      %2410 = vst.msk [vmem:[%s257] sm:$0xff] %vm1612, %v2408
      %s2411 = smul.u32 32, %s21
      %p2412 = scmp.lt.s32.totalorder %s20, 1
      %s2413 = scalar_select %p2412, %s20, 1
      %p2414 = scmp.lt.s32.totalorder %s2411, 31
      %s2415 = scalar_select %p2414, %s2411, 31
      %s2416 = smul.addr %s2413, 32
      %s2417 = sadd.s32 %s2415, %s2416
      %s2418 = smul.addr %s2417, 8
      %s2419 = scalar_lea.vmem %s2, %s2418
      %p2420 = scmp.lt.s32.totalorder %s20, 1
      %s2421 = scalar_select %p2420, %s20, 1
      %p2422 = scmp.lt.s32.totalorder %s21, 0
      %s2423 = scalar_select %p2422, %s21, 0
      %s2424 = sadd.s32 %s2423, %s2421
      %s2425 = smul.addr %s2424, 8
      %s2426 = scalar_lea.vmem %s3, %s2425
      %p2427 = scmp.lt.s32.totalorder %s20, 1
      %s2428 = scalar_select %p2427, %s20, 1
      %p2429 = scmp.lt.s32.totalorder %s21, 0
      %s2430 = scalar_select %p2429, %s21, 0
      %s2431 = sadd.s32 %s2430, %s2428
      %s2432 = smul.addr %s2431, 8
      %s2433 = scalar_lea.vmem %s4, %s2432
      // Predicated region
      $region29: #{conv_block_forward.2} parent=27 // pred_check
        %p2434 = pneg %p95
      $region30: #{conv_block_forward.2} parent=27 // pred_check_branch
        %2436 = sbr.rel (%p2434) target = $region32
      $region31: #{conv_block_forward.2} parent=27 // pred_region
        %s2437 = smul.u32 32, %s21
      $region32: #{conv_block_forward.2} parent=27 // pred_fallthru
        _
      // Predicated region
      $region33: #{conv_block_forward.2} parent=27 // pred_check
        %p2438 = pneg %p123
      $region34: #{conv_block_forward.2} parent=27 // pred_check_branch
        %2440 = sbr.rel (%p2438) target = $region36
      $region35: #{conv_block_forward.2} parent=27 // pred_region
        _
      $region36: #{conv_block_forward.2} parent=27 // pred_fallthru
        _
      // Predicated region
      $region37: #{conv_block_forward.2} parent=27 // pred_check
        %p2441 = pneg %p151
      $region38: #{conv_block_forward.2} parent=27 // pred_check_branch
        %2443 = sbr.rel (%p2441) target = $region40
      $region39: #{conv_block_forward.2} parent=27 // pred_region
        _
      $region40: #{conv_block_forward.2} parent=27 // pred_fallthru
        _
    $region28: #{conv_block_forward.2} parent=5 // pred_fallthru
      _
    %p2444 = scmp.le.s32.totalorder 2, %s11
    // Predicated region
    $region41: #{conv_block_forward.2} parent=5 // pred_check
      %p2445 = pneg %p2444
    $region42: #{conv_block_forward.2} parent=5 // pred_check_branch
      %2447 = sbr.rel (%p2445) target = $region44
    $region43: #{conv_block_forward.2} parent=5 // pred_region
      %s2448 = ssub.s32 %s11, 2
      // Predicated region
      $region45: #{conv_block_forward.2} parent=43 // pred_check
        %p2449 = pneg %p101
      $region46: #{conv_block_forward.2} parent=43 // pred_check_branch
        %2451 = sbr.rel (%p2449) target = $region48
      $region47: #{conv_block_forward.2} parent=43 // pred_region
        %s2452 = smul.u32 32, %s23
        %p2453 = scmp.lt.s32.totalorder %s22, 1
        %s2454 = scalar_select %p2453, %s22, 1
        %p2455 = scmp.lt.s32.totalorder %s2452, 31
        %s2456 = scalar_select %p2455, %s2452, 31
        %s2457 = smul.addr %s2454, 32
        %s2458 = sadd.s32 %s2456, %s2457
        %s2459 = smul.addr %s2458, 8
        %s2460 = scalar_lea.vmem %s2, %s2459
      $region48: #{conv_block_forward.2} parent=43 // pred_fallthru
        _
      // Predicated region
      $region49: #{conv_block_forward.2} parent=43 // pred_check
        %p2461 = pneg %p129
      $region50: #{conv_block_forward.2} parent=43 // pred_check_branch
        %2463 = sbr.rel (%p2461) target = $region52
      $region51: #{conv_block_forward.2} parent=43 // pred_region
        %p2464 = scmp.lt.s32.totalorder %s22, 1
        %s2465 = scalar_select %p2464, %s22, 1
        %p2466 = scmp.lt.s32.totalorder %s23, 0
        %s2467 = scalar_select %p2466, %s23, 0
        %s2468 = sadd.s32 %s2467, %s2465
        %s2469 = smul.addr %s2468, 8
        %s2470 = scalar_lea.vmem %s3, %s2469
      $region52: #{conv_block_forward.2} parent=43 // pred_fallthru
        _
      // Predicated region
      $region53: #{conv_block_forward.2} parent=43 // pred_check
        %p2471 = pneg %p157
      $region54: #{conv_block_forward.2} parent=43 // pred_check_branch
        %2473 = sbr.rel (%p2471) target = $region56
      $region55: #{conv_block_forward.2} parent=43 // pred_region
        %p2474 = scmp.lt.s32.totalorder %s22, 1
        %s2475 = scalar_select %p2474, %s22, 1
        %p2476 = scmp.lt.s32.totalorder %s23, 0
        %s2477 = scalar_select %p2476, %s23, 0
        %s2478 = sadd.s32 %s2477, %s2475
        %s2479 = smul.addr %s2478, 8
        %s2480 = scalar_lea.vmem %s4, %s2479
      $region56: #{conv_block_forward.2} parent=43 // pred_fallthru
        _
    $region44: #{conv_block_forward.2} parent=5 // pred_fallthru
      _
  $region6: #{conv_block_forward.2} parent=0 // loop_footer
    %s15 = sadd.s32 1, %s11
  $region7: #{conv_block_forward.2} parent=0 // loop_footer_branch
    %10 = sbr.rel target = $region3
  $region8: #{conv_block_forward.2} parent=0 // loop_exit
    _

</llo_original>
